<compile_context>
chip_gen: v7x
topology: tpu7x:2x2x1
jax: 0.10.0
libtpu: 0.0.40
codegen_flags: <defaults>
</compile_context>

<pallas_src>
import jax
import jax.numpy as jnp
from jax.experimental import pallas as pl
from jax.experimental.pallas import tpu as pltpu


def _gelu_tanh(x):
    # tanh-approximate GELU: one EUP tanh + ~6 VPU ops per element (vs ~15 VPU ops
    # + exp + divide for an erf polynomial).  Max abs deviation from the exact
    # erf-GELU (PyTorch default) is ~3e-4, well inside the validation tolerance.
    c = 0.7978845608028654  # sqrt(2/pi)
    x3 = x * x * x
    return 0.5 * x * (1.0 + jnp.tanh(c * (x + 0.044715 * x3)))


def _gated_attn_pool_kernel(x_ref, ew_ref, gb_ref,
                            w1_ref, b1_ref, gamma_ref, beta_ref,
                            w2_ref, b2_ref, wp_ref, bp_ref,
                            out_ref):
    """One TB-row batch tile per grid step.

    x_ref   : [TB, N, E]  element embeddings (f32 or bf16 compute dtype)
    ew_ref  : [TB, N]     element weights, f32, lane-dense
    gb_ref  : [TB, N]     additive gate bias (-1e9 on padding, else 0), f32
    w1_ref  : [E, H]      gate Linear(E, H) weight (compute dtype)
    w2_ref  : [1, H]      row vector of the Linear(H, 1) weight (compute dtype)
    b2_ref  : [1]         SMEM scalar bias of the Linear(H, 1)
    wp_ref  : [E, E]      projection weight (compute dtype)
    out_ref : [TB, E]     pooled + projected representation (lane-dense f32 store)
    """
    x = x_ref[...]                                   # [TB, N, E]
    tb, n, e = x.shape
    hdim = w1_ref.shape[1]
    cdt = x.dtype                                    # compute dtype of the big streams

    # ---- gate_nn Linear(E, H): one fused [TB*N, E] x [E, H] MXU matmul, f32 acc ----
    # (zero-copy reshape: N is padded to the sublane packing in the wrapper)
    h = jnp.dot(x.reshape(tb * n, e), w1_ref[...],
                preferred_element_type=jnp.float32)              # [TB*N, H] f32
    h = h.reshape(tb, n, hdim) + b1_ref[...]                     # [TB, N, H] f32

    # ---- LayerNorm(H)  (eps = 1e-5, elementwise affine; stats in f32) ----
    mu = jnp.mean(h, axis=-1, keepdims=True)
    var = jnp.mean((h - mu) * (h - mu), axis=-1, keepdims=True)
    hn = (h - mu) * jax.lax.rsqrt(var + 1e-5)
    hn = hn * gamma_ref[...] + beta_ref[...]

    # ---- GELU (tanh approximation); elementwise chain runs in the compute dtype ----
    act = _gelu_tanh(hn.astype(cdt))                             # [TB, N, H]

    # ---- Linear(H, 1): VPU broadcast-multiply + lane reduce (f32 accumulation) ----
    gates = jnp.sum((act * w2_ref[...]).astype(jnp.float32), axis=-1) + b2_ref[0]

    # ---- additive gate bias (-1e9 on padding): replaces int compare + select ----
    gates = gates + gb_ref[...]                                  # [TB, N]

    # ---- softmax over the element axis (lanes). NOTE: the approx reciprocal's scale
    #      error cancels exactly in the ew-renormalisation below — keep them together. ----
    m = jnp.max(gates, axis=-1, keepdims=True)
    ex = jnp.exp(gates - m)
    attn = ex * pl.reciprocal(jnp.sum(ex, axis=-1, keepdims=True), approx=True)

    # ---- combine with element_weights and renormalize (exact f32 divide) ----
    comb = attn * ew_ref[...]                                    # [TB, N]
    comb = comb / jnp.maximum(jnp.sum(comb, axis=-1, keepdims=True), 1e-10)

    # ---- weighted pooling over elements (bf16*f32 promotes to f32; f32 accumulate) ----
    pooled = jnp.sum(x * comb[:, :, None], axis=1)               # [TB, E] f32

    # ---- final projection Linear(E, E) on the MXU ----
    out = jnp.dot(pooled.astype(wp_ref.dtype), wp_ref[...],
                  preferred_element_type=jnp.float32) + bp_ref[...]
    out_ref[...] = out                                           # lane-dense [TB, E]


def _vmem_model(n_pad, e_pad, h, x_bytes):
    """VMEM budget model -> (max batch rows per tile, physical VMEM, const bytes, per-row bytes)."""
    try:
        vmem_cap = int(pltpu.get_tpu_info().vmem_capacity_bytes)
    except Exception:
        vmem_cap = 64 * 1024 * 1024            # v7x per-core floor; safe on all generations
    budget = int(vmem_cap * 0.7)               # headroom for compiler temps / spills
    # Constant blocks (ideally single-buffered): w1, wp in compute dtype + small f32 vectors.
    const_bytes = (e_pad * h + e_pad * e_pad) * x_bytes + (3 * h + e_pad) * 4 + 128
    # Per batch row: double-buffered x block, ew + gate-bias blocks, out block,
    # plus ~3 live f32 [N, H] elementwise intermediates (h / hn / act).
    per_row = (2 * n_pad * e_pad * x_bytes     # x (2 pipeline buffers)
               + 2 * 2 * n_pad * 4             # ew + gate bias (2 buffers each)
               + 2 * e_pad * 4                 # out (2 buffers)
               + 3 * n_pad * h * 4)            # elementwise intermediates
    tb_max = max(1, (budget - const_bytes) // per_row)
    return tb_max, vmem_cap, const_bytes, per_row


def gated_attention_pooling(x, element_weights, mask, params, *, tb=None,
                            compute_dtype=jnp.bfloat16):
    """x: [B, N, E] f32, element_weights: [B, N] f32, mask: [B, N] bool -> [B, E] f32.

    compute_dtype controls the x / w1 / wp / w2 streams (bf16 by default: halves the
    dominant HBM stream and runs the MXU at native rate); all accumulation, LayerNorm
    statistics, softmax and the renormalisation stay in f32.
    """
    B, N, E = x.shape
    H = params["w1"].shape[1]
    x_bytes = jnp.dtype(compute_dtype).itemsize

    # ---- padded geometry -------------------------------------------------------------
    # N padded to the sublane packing so the in-kernel reshapes are zero-copy.
    n_align = 8 * max(1, 4 // x_bytes)
    N_pad = -(-N // n_align) * n_align
    # E padded to a multiple of 128 so the output store is unmasked (lane-dense) and the
    # MXU contraction is not starved; padded columns are exact zeros and sliced off.
    E_pad = E if E % 128 == 0 else (-(-E // 128) * 128)

    # ---- batch tile from the VMEM budget + megacore constraint ------------------------
    tb_vmem, vmem_cap, const_bytes, per_row = _vmem_model(N_pad, E_pad, H, x_bytes)
    if tb is None:
        if B <= 8:
            tb = B                              # single tile (block == full array dims)
        else:
            tb = min(max(8, (tb_vmem // 8) * 8),  # VMEM-derived cap, sublane aligned
                     8 * (-(-B // 16)),           # guarantee >= 2 grid steps (v7x megacore)
                     512)
    B_pad = -(-B // tb) * tb

    # ---- operand preparation ----------------------------------------------------------
    xf = x.astype(compute_dtype)
    ew = element_weights.astype(jnp.float32)
    gb = jnp.where(mask.astype(bool), -1e9, 0.0).astype(jnp.float32)   # additive gate bias

    if N_pad != N:                                # padded elements fully masked, weight 0
        xf = jnp.pad(xf, ((0, 0), (0, N_pad - N), (0, 0)))
        ew = jnp.pad(ew, ((0, 0), (0, N_pad - N)))
        gb = jnp.pad(gb, ((0, 0), (0, N_pad - N)), constant_values=-1e9)
    if B_pad != B:                                # padded rows: finite, ignored, sliced off
        xf = jnp.pad(xf, ((0, B_pad - B), (0, 0), (0, 0)))
        ew = jnp.pad(ew, ((0, B_pad - B), (0, 0)))
        gb = jnp.pad(gb, ((0, B_pad - B), (0, 0)), constant_values=-1e9)
    if E_pad != E:                                # zero columns: exactly cancelled
        xf = jnp.pad(xf, ((0, 0), (0, 0), (0, E_pad - E)))

    w1 = params["w1"].astype(compute_dtype)
    wp = params["wp"].astype(compute_dtype)
    bp = params["bp"].astype(jnp.float32)
    if E_pad != E:
        w1 = jnp.pad(w1, ((0, E_pad - E), (0, 0)))
        wp = jnp.pad(wp, ((0, E_pad - E), (0, E_pad - E)))
        bp = jnp.pad(bp, ((0, 0), (0, E_pad - E)))
    b1 = params["b1"].astype(jnp.float32)
    gamma = params["gamma"].astype(jnp.float32)
    beta = params["beta"].astype(jnp.float32)
    w2_row = params["w2"].reshape(1, H).astype(compute_dtype)    # lane-dense row vector
    b2_sc = params["b2"].reshape(1).astype(jnp.float32)          # SMEM scalar

    # ---- VMEM limit + cost estimate ----------------------------------------------------
    est_bytes = const_bytes + tb * per_row
    vmem_limit = int(min(vmem_cap, max(est_bytes + (8 << 20), 32 << 20)))
    flops = (2 * B_pad * N_pad * E_pad * H        # gate matmul
             + 2 * B_pad * E_pad * E_pad          # projection
             + 40 * B_pad * N_pad * H)            # LN + GELU elementwise (rough)
    transcendentals = B_pad * N_pad * (H + 2)     # tanh + softmax exp / reciprocal
    bytes_accessed = (B_pad * N_pad * E_pad * x_bytes
                      + 2 * B_pad * N_pad * 4
                      + B_pad * E_pad * 4
                      + (E_pad * H + E_pad * E_pad) * x_bytes
                      + (3 * H + E_pad + 1) * 4)
    cost = pl.CostEstimate(flops=int(flops), transcendentals=int(transcendentals),
                           bytes_accessed=int(bytes_accessed))

    def build_call(single_buffer_weights):
        def const_spec(shape):
            # Weight/bias blocks with a constant index_map: single-buffer them so their
            # VMEM footprint doesn't double (freed VMEM goes to a bigger x tile).
            kw = {"pipeline_mode": pl.Buffered(1)} if single_buffer_weights else {}
            return pl.BlockSpec(shape, lambda b: (0,) * len(shape), **kw)

        in_specs = [
            pl.BlockSpec((tb, N_pad, E_pad), lambda b: (b, 0, 0)),   # x (double-buffered)
            pl.BlockSpec((tb, N_pad), lambda b: (b, 0)),             # element_weights
            pl.BlockSpec((tb, N_pad), lambda b: (b, 0)),             # additive gate bias
            const_spec((E_pad, H)),                                  # w1
            const_spec((1, H)),                                      # b1
            const_spec((1, H)),                                      # ln gamma
            const_spec((1, H)),                                      # ln beta
            const_spec((1, H)),                                      # w2 (row)
            pl.BlockSpec(memory_space=pltpu.MemorySpace.SMEM),       # b2 scalar
            const_spec((E_pad, E_pad)),                              # wp
            const_spec((1, E_pad)),                                  # bp
        ]
        return pl.pallas_call(
            _gated_attn_pool_kernel,
            out_shape=jax.ShapeDtypeStruct((B_pad, E_pad), jnp.float32),
            grid=(B_pad // tb,),
            in_specs=in_specs,
            out_specs=pl.BlockSpec((tb, E_pad), lambda b: (b, 0)),
            compiler_params=pltpu.CompilerParams(
                dimension_semantics=("parallel",),
                vmem_limit_bytes=vmem_limit),
            cost_estimate=cost,
        )

    args = (xf, ew, gb, w1, b1, gamma, beta, w2_row, b2_sc, wp, bp)
    try:
        out = build_call(True)(*args)
    except Exception:
        # pipeline_mode=pl.Buffered(1) not supported by this jax version/lowering path:
        # fall back to default double-buffered weight blocks (costs VMEM only).
        out = build_call(False)(*args)
    return out[:B, :E]


def reference_forward(x, element_weights, mask, params):
    """Pure-JAX reference mirroring the PyTorch forward exactly (f32, exact erf GELU)."""
    h = x @ params["w1"] + params["b1"]
    mu = jnp.mean(h, axis=-1, keepdims=True)
    var = jnp.mean((h - mu) ** 2, axis=-1, keepdims=True)
    hn = (h - mu) * jax.lax.rsqrt(var + 1e-5) * params["gamma"] + params["beta"]
    act = jax.nn.gelu(hn, approximate=False)
    gates = act @ params["w2"] + params["b2"][0, 0]          # [B, N, 1]
    gates = jnp.where(mask[..., None], -1000000000.0, gates)
    attn = jax.nn.softmax(gates, axis=1)
    ew = element_weights[..., None]
    comb = attn * ew
    comb = comb / jnp.clip(jnp.sum(comb, axis=1, keepdims=True), min=1e-10)
    pooled = jnp.sum(x * comb, axis=1)
    return pooled @ params["wp"] + params["bp"]


def init_params(key, embedding_dim, hidden_dim):
    ks = jax.random.split(key, 6)
    E, H = embedding_dim, hidden_dim
    return {
        "w1": 0.05 * jax.random.normal(ks[0], (E, H), jnp.float32),
        "b1": 0.05 * jax.random.normal(ks[1], (1, H), jnp.float32),
        "gamma": jnp.ones((1, H), jnp.float32),
        "beta": jnp.zeros((1, H), jnp.float32),
        "w2": 0.05 * jax.random.normal(ks[2], (H, 1), jnp.float32),
        "b2": 0.05 * jax.random.normal(ks[3], (1, 1), jnp.float32),
        "wp": 0.05 * jax.random.normal(ks[4], (E, E), jnp.float32),
        "bp": 0.05 * jax.random.normal(ks[5], (1, E), jnp.float32),
    }


if __name__ == "__main__":
    B, N, E = 2, 8, 32   # batch, max_elements, embedding_dim (hidden_dim = E)
    key = jax.random.PRNGKey(0)
    kx, kw, kp = jax.random.split(key, 3)

    x = jax.random.normal(kx, (B, N, E), jnp.float32)
    element_weights = jax.nn.softplus(jax.random.normal(kw, (B, N), jnp.float32))
    # last 3 elements of the second batch item are padding
    mask = jnp.zeros((B, N), dtype=bool).at[1, N - 3:].set(True)

    params = init_params(kp, E, E)
    ref = reference_forward(x, element_weights, mask, params)

    # 1) exact-stream path (f32) vs the f32 reference: tanh-GELU is the only numerical
    #    difference (max ~3e-4 in the activation, far less after the projection).
    out_f32 = gated_attention_pooling(x, element_weights, mask, params,
                                      compute_dtype=jnp.float32)
    out_f32 = jax.block_until_ready(out_f32)
    assert out_f32.shape == (B, E)
    assert jnp.allclose(out_f32, ref, atol=1e-3, rtol=1e-3), (
        f"f32 path max abs err = {jnp.max(jnp.abs(out_f32 - ref))}")

    # 2) production path (bf16 x / w1 / wp / w2 streams): looser tolerance reflects the
    #    bf16 quantisation of the inputs/weights (f32 accumulation throughout).
    out_bf16 = gated_attention_pooling(x, element_weights, mask, params)
    out_bf16 = jax.block_until_ready(out_bf16)
    assert out_bf16.shape == (B, E)
    assert jnp.allclose(out_bf16, ref, atol=5e-2, rtol=5e-2), (
        f"bf16 path max abs err = {jnp.max(jnp.abs(out_bf16 - ref))}")

    print("KERNEL_OK")
</pallas_src>

<mosaic_0001>
module attributes {stable_mosaic.version = 11 : i64} {
  func.func @_gated_attn_pool_kernel(%arg0: i32, %arg1: memref<2x8x128xf32, #tpu.memory_space<vmem>>, %arg2: memref<2x8xf32, #tpu.memory_space<vmem>>, %arg3: memref<2x8xf32, #tpu.memory_space<vmem>>, %arg4: memref<128x32xf32, #tpu.memory_space<vmem>>, %arg5: memref<1x32xf32, #tpu.memory_space<vmem>>, %arg6: memref<1x32xf32, #tpu.memory_space<vmem>>, %arg7: memref<1x32xf32, #tpu.memory_space<vmem>>, %arg8: memref<1x32xf32, #tpu.memory_space<vmem>>, %arg9: memref<1xf32, #tpu.memory_space<smem>>, %arg10: memref<128x128xf32, #tpu.memory_space<vmem>>, %arg11: memref<1x128xf32, #tpu.memory_space<vmem>>, %arg12: memref<2x128xf32, #tpu.memory_space<vmem>>) attributes {dimension_semantics = [#tpu.dimension_semantics<parallel>], iteration_bounds = array<i64: 1>, scalar_prefetch = 0 : i64, scratch_operands = 0 : i64, tpu.core_type = #tpu.core_type<tc>, window_params = [{transform_indices = @transform_0, window_bounds = array<i64: 2, 8, 128>}, {transform_indices = @transform_1, window_bounds = array<i64: 2, 8>}, {transform_indices = @transform_2, window_bounds = array<i64: 2, 8>}, {pipeline_mode = #tpu.pipeline_mode<synchronous>, transform_indices = @transform_3, window_bounds = array<i64: 128, 32>}, {pipeline_mode = #tpu.pipeline_mode<synchronous>, transform_indices = @transform_4, window_bounds = array<i64: 1, 32>}, {pipeline_mode = #tpu.pipeline_mode<synchronous>, transform_indices = @transform_5, window_bounds = array<i64: 1, 32>}, {pipeline_mode = #tpu.pipeline_mode<synchronous>, transform_indices = @transform_6, window_bounds = array<i64: 1, 32>}, {pipeline_mode = #tpu.pipeline_mode<synchronous>, transform_indices = @transform_7, window_bounds = array<i64: 1, 32>}, {transform_indices = @transform_8, window_bounds = array<i64: 1>}, {pipeline_mode = #tpu.pipeline_mode<synchronous>, transform_indices = @transform_9, window_bounds = array<i64: 128, 128>}, {pipeline_mode = #tpu.pipeline_mode<synchronous>, transform_indices = @transform_10, window_bounds = array<i64: 1, 128>}, {transform_indices = @transform_11, window_bounds = array<i64: 2, 128>}]} {
    %c0 = arith.constant 0 : index
    %c0_0 = arith.constant 0 : index
    %c0_1 = arith.constant 0 : index
    %0 = vector.load %arg1[%c0, %c0_0, %c0_1] : memref<2x8x128xf32, #tpu.memory_space<vmem>>, vector<2x8x128xf32>
    %1 = vector.shape_cast %0 : vector<2x8x128xf32> to vector<16x128xf32>
    %c0_2 = arith.constant 0 : index
    %c0_3 = arith.constant 0 : index
    %2 = vector.load %arg4[%c0_2, %c0_3] : memref<128x32xf32, #tpu.memory_space<vmem>>, vector<128x32xf32>
    %cst = arith.constant dense<0.000000e+00> : vector<16x32xf32>
    %3 = tpu.matmul %1, %2, %cst {dimension_numbers = #tpu.dot_dimension_numbers<[1], [0], [0], [1], [0, 0, 1, 1], [], []>} : vector<16x128xf32>, vector<128x32xf32>, vector<16x32xf32> -> vector<16x32xf32>
    %4 = vector.shape_cast %3 : vector<16x32xf32> to vector<2x8x32xf32>
    %c0_4 = arith.constant 0 : index
    %c0_5 = arith.constant 0 : index
    %5 = vector.load %arg5[%c0_4, %c0_5] : memref<1x32xf32, #tpu.memory_space<vmem>>, vector<1x32xf32>
    %6 = vector.shape_cast %5 : vector<1x32xf32> to vector<1x1x32xf32>
    %7 = vector.broadcast %6 : vector<1x1x32xf32> to vector<2x8x32xf32>
    %8 = arith.addf %4, %7 : vector<2x8x32xf32>
    %cst_6 = arith.constant dense<0.000000e+00> : vector<2x8xf32>
    %9 = vector.multi_reduction <add>, %8, %cst_6 [2] : vector<2x8x32xf32> to vector<2x8xf32>
    %10 = vector.shape_cast %9 : vector<2x8xf32> to vector<2x8x1xf32>
    %cst_7 = arith.constant 3.200000e+01 : f32
    %11 = vector.broadcast %cst_7 : f32 to vector<2x8x1xf32>
    %12 = arith.divf %10, %11 : vector<2x8x1xf32>
    %13 = vector.broadcast %12 : vector<2x8x1xf32> to vector<2x8x32xf32>
    %14 = arith.subf %8, %13 : vector<2x8x32xf32>
    %15 = vector.broadcast %12 : vector<2x8x1xf32> to vector<2x8x32xf32>
    %16 = arith.subf %8, %15 : vector<2x8x32xf32>
    %17 = arith.mulf %14, %16 : vector<2x8x32xf32>
    %cst_8 = arith.constant dense<0.000000e+00> : vector<2x8xf32>
    %18 = vector.multi_reduction <add>, %17, %cst_8 [2] : vector<2x8x32xf32> to vector<2x8xf32>
    %19 = vector.shape_cast %18 : vector<2x8xf32> to vector<2x8x1xf32>
    %cst_9 = arith.constant 3.200000e+01 : f32
    %20 = vector.broadcast %cst_9 : f32 to vector<2x8x1xf32>
    %21 = arith.divf %19, %20 : vector<2x8x1xf32>
    %22 = vector.broadcast %12 : vector<2x8x1xf32> to vector<2x8x32xf32>
    %23 = arith.subf %8, %22 : vector<2x8x32xf32>
    %cst_10 = arith.constant 9.99999974E-6 : f32
    %24 = vector.broadcast %cst_10 : f32 to vector<2x8x1xf32>
    %25 = arith.addf %21, %24 : vector<2x8x1xf32>
    %26 = math.rsqrt %25 : vector<2x8x1xf32>
    %27 = vector.broadcast %26 : vector<2x8x1xf32> to vector<2x8x32xf32>
    %28 = arith.mulf %23, %27 : vector<2x8x32xf32>
    %c0_11 = arith.constant 0 : index
    %c0_12 = arith.constant 0 : index
    %29 = vector.load %arg6[%c0_11, %c0_12] : memref<1x32xf32, #tpu.memory_space<vmem>>, vector<1x32xf32>
    %30 = vector.shape_cast %29 : vector<1x32xf32> to vector<1x1x32xf32>
    %31 = vector.broadcast %30 : vector<1x1x32xf32> to vector<2x8x32xf32>
    %32 = arith.mulf %28, %31 : vector<2x8x32xf32>
    %c0_13 = arith.constant 0 : index
    %c0_14 = arith.constant 0 : index
    %33 = vector.load %arg7[%c0_13, %c0_14] : memref<1x32xf32, #tpu.memory_space<vmem>>, vector<1x32xf32>
    %34 = vector.shape_cast %33 : vector<1x32xf32> to vector<1x1x32xf32>
    %35 = vector.broadcast %34 : vector<1x1x32xf32> to vector<2x8x32xf32>
    %36 = arith.addf %32, %35 : vector<2x8x32xf32>
    %37 = arith.mulf %36, %36 : vector<2x8x32xf32>
    %38 = arith.mulf %37, %36 : vector<2x8x32xf32>
    %cst_15 = arith.constant 5.000000e-01 : f32
    %39 = vector.broadcast %cst_15 : f32 to vector<2x8x32xf32>
    %40 = arith.mulf %39, %36 : vector<2x8x32xf32>
    %cst_16 = arith.constant 4.471500e-02 : f32
    %41 = vector.broadcast %cst_16 : f32 to vector<2x8x32xf32>
    %42 = arith.mulf %41, %38 : vector<2x8x32xf32>
    %43 = arith.addf %36, %42 : vector<2x8x32xf32>
    %cst_17 = arith.constant 0.797884583 : f32
    %44 = vector.broadcast %cst_17 : f32 to vector<2x8x32xf32>
    %45 = arith.mulf %44, %43 : vector<2x8x32xf32>
    %46 = math.tanh %45 : vector<2x8x32xf32>
    %cst_18 = arith.constant 1.000000e+00 : f32
    %47 = vector.broadcast %cst_18 : f32 to vector<2x8x32xf32>
    %48 = arith.addf %47, %46 : vector<2x8x32xf32>
    %49 = arith.mulf %40, %48 : vector<2x8x32xf32>
    %c0_19 = arith.constant 0 : index
    %c0_20 = arith.constant 0 : index
    %50 = vector.load %arg8[%c0_19, %c0_20] : memref<1x32xf32, #tpu.memory_space<vmem>>, vector<1x32xf32>
    %51 = vector.shape_cast %50 : vector<1x32xf32> to vector<1x1x32xf32>
    %52 = vector.broadcast %51 : vector<1x1x32xf32> to vector<2x8x32xf32>
    %53 = arith.mulf %49, %52 : vector<2x8x32xf32>
    %cst_21 = arith.constant dense<0.000000e+00> : vector<2x8xf32>
    %54 = vector.multi_reduction <add>, %53, %cst_21 [2] : vector<2x8x32xf32> to vector<2x8xf32>
    %c0_22 = arith.constant 0 : index
    %55 = memref.load %arg9[%c0_22] : memref<1xf32, #tpu.memory_space<smem>>
    %56 = vector.broadcast %55 : f32 to vector<2x8xf32>
    %57 = arith.addf %54, %56 : vector<2x8xf32>
    %c0_23 = arith.constant 0 : index
    %c0_24 = arith.constant 0 : index
    %58 = vector.load %arg3[%c0_23, %c0_24] : memref<2x8xf32, #tpu.memory_space<vmem>>, vector<2x8xf32>
    %59 = arith.addf %57, %58 : vector<2x8xf32>
    %cst_25 = arith.constant dense<0xFF800000> : vector<2xf32>
    %60 = vector.multi_reduction <maximumf>, %59, %cst_25 [1] : vector<2x8xf32> to vector<2xf32>
    %61 = vector.shape_cast %60 : vector<2xf32> to vector<2x1xf32>
    %62 = vector.broadcast %61 : vector<2x1xf32> to vector<2x8xf32>
    %63 = arith.subf %59, %62 : vector<2x8xf32>
    %64 = math.exp %63 : vector<2x8xf32>
    %cst_26 = arith.constant dense<0.000000e+00> : vector<2xf32>
    %65 = vector.multi_reduction <add>, %64, %cst_26 [1] : vector<2x8xf32> to vector<2xf32>
    %66 = vector.shape_cast %65 : vector<2xf32> to vector<2x1xf32>
    %67 = tpu.reciprocal %66 {approx = true} : vector<2x1xf32> -> vector<2x1xf32>
    %68 = vector.broadcast %67 : vector<2x1xf32> to vector<2x8xf32>
    %69 = arith.mulf %64, %68 : vector<2x8xf32>
    %c0_27 = arith.constant 0 : index
    %c0_28 = arith.constant 0 : index
    %70 = vector.load %arg2[%c0_27, %c0_28] : memref<2x8xf32, #tpu.memory_space<vmem>>, vector<2x8xf32>
    %71 = arith.mulf %69, %70 : vector<2x8xf32>
    %cst_29 = arith.constant dense<0.000000e+00> : vector<2xf32>
    %72 = vector.multi_reduction <add>, %71, %cst_29 [1] : vector<2x8xf32> to vector<2xf32>
    %73 = vector.shape_cast %72 : vector<2xf32> to vector<2x1xf32>
    %cst_30 = arith.constant 1.000000e-10 : f32
    %74 = vector.broadcast %cst_30 : f32 to vector<2x1xf32>
    %75 = arith.maximumf %73, %74 : vector<2x1xf32>
    %76 = vector.broadcast %75 : vector<2x1xf32> to vector<2x8xf32>
    %77 = arith.divf %71, %76 : vector<2x8xf32>
    %78 = vector.shape_cast %77 : vector<2x8xf32> to vector<2x8x1xf32>
    %79 = vector.broadcast %78 : vector<2x8x1xf32> to vector<2x8x128xf32>
    %80 = arith.mulf %0, %79 : vector<2x8x128xf32>
    %cst_31 = arith.constant dense<0.000000e+00> : vector<2x128xf32>
    %81 = vector.multi_reduction <add>, %80, %cst_31 [1] : vector<2x8x128xf32> to vector<2x128xf32>
    %c0_32 = arith.constant 0 : index
    %c0_33 = arith.constant 0 : index
    %82 = vector.load %arg10[%c0_32, %c0_33] : memref<128x128xf32, #tpu.memory_space<vmem>>, vector<128x128xf32>
    %cst_34 = arith.constant dense<0.000000e+00> : vector<2x128xf32>
    %83 = tpu.matmul %81, %82, %cst_34 {dimension_numbers = #tpu.dot_dimension_numbers<[1], [0], [0], [1], [0, 0, 1, 1], [], []>} : vector<2x128xf32>, vector<128x128xf32>, vector<2x128xf32> -> vector<2x128xf32>
    %c0_35 = arith.constant 0 : index
    %c0_36 = arith.constant 0 : index
    %84 = vector.load %arg11[%c0_35, %c0_36] : memref<1x128xf32, #tpu.memory_space<vmem>>, vector<1x128xf32>
    %85 = vector.broadcast %84 : vector<1x128xf32> to vector<2x128xf32>
    %86 = arith.addf %83, %85 : vector<2x128xf32>
    %c0_37 = arith.constant 0 : index
    %c0_38 = arith.constant 0 : index
    %87 = vector.load %arg12[%c0_37, %c0_38] : memref<2x128xf32, #tpu.memory_space<vmem>>, vector<2x128xf32>
    tpu.vector_store %arg12[%c0_37, %c0_38], %86 {strides = array<i32>} : memref<2x128xf32, #tpu.memory_space<vmem>>, vector<2x128xf32>,
    return
  }
  func.func @transform_0(%arg0: i32) -> (i32, i32, i32) {
    %c0_i32 = arith.constant 0 : i32
    %c0_i32_0 = arith.constant 0 : i32
    %c0_i32_1 = arith.constant 0 : i32
    return %arg0, %c0_i32, %c0_i32_0 : i32, i32, i32
  }
  func.func @transform_1(%arg0: i32) -> (i32, i32) {
    %c0_i32 = arith.constant 0 : i32
    %c0_i32_0 = arith.constant 0 : i32
    return %arg0, %c0_i32 : i32, i32
  }
  func.func @transform_2(%arg0: i32) -> (i32, i32) {
    %c0_i32 = arith.constant 0 : i32
    %c0_i32_0 = arith.constant 0 : i32
    return %arg0, %c0_i32 : i32, i32
  }
  func.func @transform_3(%arg0: i32) -> (i32, i32) {
    %c0_i32 = arith.constant 0 : i32
    %c0_i32_0 = arith.constant 0 : i32
    %c0_i32_1 = arith.constant 0 : i32
    return %c0_i32, %c0_i32_0 : i32, i32
  }
  func.func @transform_4(%arg0: i32) -> (i32, i32) {
    %c0_i32 = arith.constant 0 : i32
    %c0_i32_0 = arith.constant 0 : i32
    %c0_i32_1 = arith.constant 0 : i32
    return %c0_i32, %c0_i32_0 : i32, i32
  }
  func.func @transform_5(%arg0: i32) -> (i32, i32) {
    %c0_i32 = arith.constant 0 : i32
    %c0_i32_0 = arith.constant 0 : i32
    %c0_i32_1 = arith.constant 0 : i32
    return %c0_i32, %c0_i32_0 : i32, i32
  }
  func.func @transform_6(%arg0: i32) -> (i32, i32) {
    %c0_i32 = arith.constant 0 : i32
    %c0_i32_0 = arith.constant 0 : i32
    %c0_i32_1 = arith.constant 0 : i32
    return %c0_i32, %c0_i32_0 : i32, i32
  }
  func.func @transform_7(%arg0: i32) -> (i32, i32) {
    %c0_i32 = arith.constant 0 : i32
    %c0_i32_0 = arith.constant 0 : i32
    %c0_i32_1 = arith.constant 0 : i32
    return %c0_i32, %c0_i32_0 : i32, i32
  }
  func.func @transform_8(%arg0: i32) -> i32 {
    %c0_i32 = arith.constant 0 : i32
    %c0_i32_0 = arith.constant 0 : i32
    return %c0_i32 : i32
  }
  func.func @transform_9(%arg0: i32) -> (i32, i32) {
    %c0_i32 = arith.constant 0 : i32
    %c0_i32_0 = arith.constant 0 : i32
    %c0_i32_1 = arith.constant 0 : i32
    return %c0_i32, %c0_i32_0 : i32, i32
  }
  func.func @transform_10(%arg0: i32) -> (i32, i32) {
    %c0_i32 = arith.constant 0 : i32
    %c0_i32_0 = arith.constant 0 : i32
    %c0_i32_1 = arith.constant 0 : i32
    return %c0_i32, %c0_i32_0 : i32, i32
  }
  func.func @transform_11(%arg0: i32) -> (i32, i32) {
    %c0_i32 = arith.constant 0 : i32
    %c0_i32_0 = arith.constant 0 : i32
    return %arg0, %c0_i32 : i32, i32
  }
}

module attributes {stable_mosaic.version = 11 : i64} {
  func.func @_gated_attn_pool_kernel(%arg0: i32, %arg1: memref<2x8x128xf32, #tpu.memory_space<vmem>>, %arg2: memref<2x8xf32, #tpu.memory_space<vmem>>, %arg3: memref<2x8xf32, #tpu.memory_space<vmem>>, %arg4: memref<128x32xf32, #tpu.memory_space<vmem>>, %arg5: memref<1x32xf32, #tpu.memory_space<vmem>>, %arg6: memref<1x32xf32, #tpu.memory_space<vmem>>, %arg7: memref<1x32xf32, #tpu.memory_space<vmem>>, %arg8: memref<1x32xf32, #tpu.memory_space<vmem>>, %arg9: memref<1xf32, #tpu.memory_space<smem>>, %arg10: memref<128x128xf32, #tpu.memory_space<vmem>>, %arg11: memref<1x128xf32, #tpu.memory_space<vmem>>, %arg12: memref<2x128xf32, #tpu.memory_space<vmem>>) attributes {dimension_semantics = [#tpu.dimension_semantics<parallel>], iteration_bounds = array<i64: 1>, scalar_prefetch = 0 : i64, scratch_operands = 0 : i64, tpu.core_type = #tpu.core_type<tc>, window_params = [{transform_indices = @transform_0, window_bounds = array<i64: 2, 8, 128>}, {transform_indices = @transform_1, window_bounds = array<i64: 2, 8>}, {transform_indices = @transform_2, window_bounds = array<i64: 2, 8>}, {pipeline_mode = #tpu.pipeline_mode<synchronous>, transform_indices = @transform_3, window_bounds = array<i64: 128, 32>}, {pipeline_mode = #tpu.pipeline_mode<synchronous>, transform_indices = @transform_4, window_bounds = array<i64: 1, 32>}, {pipeline_mode = #tpu.pipeline_mode<synchronous>, transform_indices = @transform_5, window_bounds = array<i64: 1, 32>}, {pipeline_mode = #tpu.pipeline_mode<synchronous>, transform_indices = @transform_6, window_bounds = array<i64: 1, 32>}, {pipeline_mode = #tpu.pipeline_mode<synchronous>, transform_indices = @transform_7, window_bounds = array<i64: 1, 32>}, {transform_indices = @transform_8, window_bounds = array<i64: 1>}, {pipeline_mode = #tpu.pipeline_mode<synchronous>, transform_indices = @transform_9, window_bounds = array<i64: 128, 128>}, {pipeline_mode = #tpu.pipeline_mode<synchronous>, transform_indices = @transform_10, window_bounds = array<i64: 1, 128>}, {transform_indices = @transform_11, window_bounds = array<i64: 2, 128>}]} {
    %c0 = arith.constant 0 : index
    %c0_0 = arith.constant 0 : index
    %c0_1 = arith.constant 0 : index
    %0 = vector.load %arg1[%c0, %c0_0, %c0_1] : memref<2x8x128xf32, #tpu.memory_space<vmem>>, vector<2x8x128xf32>
    %1 = vector.shape_cast %0 : vector<2x8x128xf32> to vector<16x128xf32>
    %c0_2 = arith.constant 0 : index
    %c0_3 = arith.constant 0 : index
    %2 = vector.load %arg4[%c0_2, %c0_3] : memref<128x32xf32, #tpu.memory_space<vmem>>, vector<128x32xf32>
    %cst = arith.constant dense<0.000000e+00> : vector<16x32xf32>
    %3 = tpu.matmul %1, %2, %cst {dimension_numbers = #tpu.dot_dimension_numbers<[1], [0], [0], [1], [0, 0, 1, 1], [], []>} : vector<16x128xf32>, vector<128x32xf32>, vector<16x32xf32> -> vector<16x32xf32>
    %4 = vector.shape_cast %3 : vector<16x32xf32> to vector<2x8x32xf32>
    %c0_4 = arith.constant 0 : index
    %c0_5 = arith.constant 0 : index
    %5 = vector.load %arg5[%c0_4, %c0_5] : memref<1x32xf32, #tpu.memory_space<vmem>>, vector<1x32xf32>
    %6 = vector.shape_cast %5 : vector<1x32xf32> to vector<1x1x32xf32>
    %7 = vector.broadcast %6 : vector<1x1x32xf32> to vector<2x8x32xf32>
    %8 = arith.addf %4, %7 : vector<2x8x32xf32>
    %cst_6 = arith.constant dense<0.000000e+00> : vector<2x8xf32>
    %9 = vector.multi_reduction <add>, %8, %cst_6 [2] : vector<2x8x32xf32> to vector<2x8xf32>
    %10 = vector.shape_cast %9 : vector<2x8xf32> to vector<2x8x1xf32>
    %cst_7 = arith.constant 3.200000e+01 : f32
    %11 = vector.broadcast %cst_7 : f32 to vector<2x8x1xf32>
    %12 = arith.divf %10, %11 : vector<2x8x1xf32>
    %13 = vector.broadcast %12 : vector<2x8x1xf32> to vector<2x8x32xf32>
    %14 = arith.subf %8, %13 : vector<2x8x32xf32>
    %15 = vector.broadcast %12 : vector<2x8x1xf32> to vector<2x8x32xf32>
    %16 = arith.subf %8, %15 : vector<2x8x32xf32>
    %17 = arith.mulf %14, %16 : vector<2x8x32xf32>
    %cst_8 = arith.constant dense<0.000000e+00> : vector<2x8xf32>
    %18 = vector.multi_reduction <add>, %17, %cst_8 [2] : vector<2x8x32xf32> to vector<2x8xf32>
    %19 = vector.shape_cast %18 : vector<2x8xf32> to vector<2x8x1xf32>
    %cst_9 = arith.constant 3.200000e+01 : f32
    %20 = vector.broadcast %cst_9 : f32 to vector<2x8x1xf32>
    %21 = arith.divf %19, %20 : vector<2x8x1xf32>
    %22 = vector.broadcast %12 : vector<2x8x1xf32> to vector<2x8x32xf32>
    %23 = arith.subf %8, %22 : vector<2x8x32xf32>
    %cst_10 = arith.constant 9.99999974E-6 : f32
    %24 = vector.broadcast %cst_10 : f32 to vector<2x8x1xf32>
    %25 = arith.addf %21, %24 : vector<2x8x1xf32>
    %26 = math.rsqrt %25 : vector<2x8x1xf32>
    %27 = vector.broadcast %26 : vector<2x8x1xf32> to vector<2x8x32xf32>
    %28 = arith.mulf %23, %27 : vector<2x8x32xf32>
    %c0_11 = arith.constant 0 : index
    %c0_12 = arith.constant 0 : index
    %29 = vector.load %arg6[%c0_11, %c0_12] : memref<1x32xf32, #tpu.memory_space<vmem>>, vector<1x32xf32>
    %30 = vector.shape_cast %29 : vector<1x32xf32> to vector<1x1x32xf32>
    %31 = vector.broadcast %30 : vector<1x1x32xf32> to vector<2x8x32xf32>
    %32 = arith.mulf %28, %31 : vector<2x8x32xf32>
    %c0_13 = arith.constant 0 : index
    %c0_14 = arith.constant 0 : index
    %33 = vector.load %arg7[%c0_13, %c0_14] : memref<1x32xf32, #tpu.memory_space<vmem>>, vector<1x32xf32>
    %34 = vector.shape_cast %33 : vector<1x32xf32> to vector<1x1x32xf32>
    %35 = vector.broadcast %34 : vector<1x1x32xf32> to vector<2x8x32xf32>
    %36 = arith.addf %32, %35 : vector<2x8x32xf32>
    %37 = arith.mulf %36, %36 : vector<2x8x32xf32>
    %38 = arith.mulf %37, %36 : vector<2x8x32xf32>
    %cst_15 = arith.constant 5.000000e-01 : f32
    %39 = vector.broadcast %cst_15 : f32 to vector<2x8x32xf32>
    %40 = arith.mulf %39, %36 : vector<2x8x32xf32>
    %cst_16 = arith.constant 4.471500e-02 : f32
    %41 = vector.broadcast %cst_16 : f32 to vector<2x8x32xf32>
    %42 = arith.mulf %41, %38 : vector<2x8x32xf32>
    %43 = arith.addf %36, %42 : vector<2x8x32xf32>
    %cst_17 = arith.constant 0.797884583 : f32
    %44 = vector.broadcast %cst_17 : f32 to vector<2x8x32xf32>
    %45 = arith.mulf %44, %43 : vector<2x8x32xf32>
    %46 = math.tanh %45 : vector<2x8x32xf32>
    %cst_18 = arith.constant 1.000000e+00 : f32
    %47 = vector.broadcast %cst_18 : f32 to vector<2x8x32xf32>
    %48 = arith.addf %47, %46 : vector<2x8x32xf32>
    %49 = arith.mulf %40, %48 : vector<2x8x32xf32>
    %c0_19 = arith.constant 0 : index
    %c0_20 = arith.constant 0 : index
    %50 = vector.load %arg8[%c0_19, %c0_20] : memref<1x32xf32, #tpu.memory_space<vmem>>, vector<1x32xf32>
    %51 = vector.shape_cast %50 : vector<1x32xf32> to vector<1x1x32xf32>
    %52 = vector.broadcast %51 : vector<1x1x32xf32> to vector<2x8x32xf32>
    %53 = arith.mulf %49, %52 : vector<2x8x32xf32>
    %cst_21 = arith.constant dense<0.000000e+00> : vector<2x8xf32>
    %54 = vector.multi_reduction <add>, %53, %cst_21 [2] : vector<2x8x32xf32> to vector<2x8xf32>
    %c0_22 = arith.constant 0 : index
    %55 = memref.load %arg9[%c0_22] : memref<1xf32, #tpu.memory_space<smem>>
    %56 = vector.broadcast %55 : f32 to vector<2x8xf32>
    %57 = arith.addf %54, %56 : vector<2x8xf32>
    %c0_23 = arith.constant 0 : index
    %c0_24 = arith.constant 0 : index
    %58 = vector.load %arg3[%c0_23, %c0_24] : memref<2x8xf32, #tpu.memory_space<vmem>>, vector<2x8xf32>
    %59 = arith.addf %57, %58 : vector<2x8xf32>
    %cst_25 = arith.constant dense<0xFF800000> : vector<2xf32>
    %60 = vector.multi_reduction <maximumf>, %59, %cst_25 [1] : vector<2x8xf32> to vector<2xf32>
    %61 = vector.shape_cast %60 : vector<2xf32> to vector<2x1xf32>
    %62 = vector.broadcast %61 : vector<2x1xf32> to vector<2x8xf32>
    %63 = arith.subf %59, %62 : vector<2x8xf32>
    %64 = math.exp %63 : vector<2x8xf32>
    %cst_26 = arith.constant dense<0.000000e+00> : vector<2xf32>
    %65 = vector.multi_reduction <add>, %64, %cst_26 [1] : vector<2x8xf32> to vector<2xf32>
    %66 = vector.shape_cast %65 : vector<2xf32> to vector<2x1xf32>
    %67 = tpu.reciprocal %66 {approx = true} : vector<2x1xf32> -> vector<2x1xf32>
    %68 = vector.broadcast %67 : vector<2x1xf32> to vector<2x8xf32>
    %69 = arith.mulf %64, %68 : vector<2x8xf32>
    %c0_27 = arith.constant 0 : index
    %c0_28 = arith.constant 0 : index
    %70 = vector.load %arg2[%c0_27, %c0_28] : memref<2x8xf32, #tpu.memory_space<vmem>>, vector<2x8xf32>
    %71 = arith.mulf %69, %70 : vector<2x8xf32>
    %cst_29 = arith.constant dense<0.000000e+00> : vector<2xf32>
    %72 = vector.multi_reduction <add>, %71, %cst_29 [1] : vector<2x8xf32> to vector<2xf32>
    %73 = vector.shape_cast %72 : vector<2xf32> to vector<2x1xf32>
    %cst_30 = arith.constant 1.000000e-10 : f32
    %74 = vector.broadcast %cst_30 : f32 to vector<2x1xf32>
    %75 = arith.maximumf %73, %74 : vector<2x1xf32>
    %76 = vector.broadcast %75 : vector<2x1xf32> to vector<2x8xf32>
    %77 = arith.divf %71, %76 : vector<2x8xf32>
    %78 = vector.shape_cast %77 : vector<2x8xf32> to vector<2x8x1xf32>
    %79 = vector.broadcast %78 : vector<2x8x1xf32> to vector<2x8x128xf32>
    %80 = arith.mulf %0, %79 : vector<2x8x128xf32>
    %cst_31 = arith.constant dense<0.000000e+00> : vector<2x128xf32>
    %81 = vector.multi_reduction <add>, %80, %cst_31 [1] : vector<2x8x128xf32> to vector<2x128xf32>
    %c0_32 = arith.constant 0 : index
    %c0_33 = arith.constant 0 : index
    %82 = vector.load %arg10[%c0_32, %c0_33] : memref<128x128xf32, #tpu.memory_space<vmem>>, vector<128x128xf32>
    %cst_34 = arith.constant dense<0.000000e+00> : vector<2x128xf32>
    %83 = tpu.matmul %81, %82, %cst_34 {dimension_numbers = #tpu.dot_dimension_numbers<[1], [0], [0], [1], [0, 0, 1, 1], [], []>} : vector<2x128xf32>, vector<128x128xf32>, vector<2x128xf32> -> vector<2x128xf32>
    %c0_35 = arith.constant 0 : index
    %c0_36 = arith.constant 0 : index
    %84 = vector.load %arg11[%c0_35, %c0_36] : memref<1x128xf32, #tpu.memory_space<vmem>>, vector<1x128xf32>
    %85 = vector.broadcast %84 : vector<1x128xf32> to vector<2x128xf32>
    %86 = arith.addf %83, %85 : vector<2x128xf32>
    %c0_37 = arith.constant 0 : index
    %c0_38 = arith.constant 0 : index
    %87 = vector.load %arg12[%c0_37, %c0_38] : memref<2x128xf32, #tpu.memory_space<vmem>>, vector<2x128xf32>
    tpu.vector_store %arg12[%c0_37, %c0_38], %86 {strides = array<i32>} : memref<2x128xf32, #tpu.memory_space<vmem>>, vector<2x128xf32>,
    return
  }
  func.func @transform_0(%arg0: i32) -> (i32, i32, i32) {
    %c0_i32 = arith.constant 0 : i32
    %c0_i32_0 = arith.constant 0 : i32
    %c0_i32_1 = arith.constant 0 : i32
    return %arg0, %c0_i32, %c0_i32_0 : i32, i32, i32
  }
  func.func @transform_1(%arg0: i32) -> (i32, i32) {
    %c0_i32 = arith.constant 0 : i32
    %c0_i32_0 = arith.constant 0 : i32
    return %arg0, %c0_i32 : i32, i32
  }
  func.func @transform_2(%arg0: i32) -> (i32, i32) {
    %c0_i32 = arith.constant 0 : i32
    %c0_i32_0 = arith.constant 0 : i32
    return %arg0, %c0_i32 : i32, i32
  }
  func.func @transform_3(%arg0: i32) -> (i32, i32) {
    %c0_i32 = arith.constant 0 : i32
    %c0_i32_0 = arith.constant 0 : i32
    %c0_i32_1 = arith.constant 0 : i32
    return %c0_i32, %c0_i32_0 : i32, i32
  }
  func.func @transform_4(%arg0: i32) -> (i32, i32) {
    %c0_i32 = arith.constant 0 : i32
    %c0_i32_0 = arith.constant 0 : i32
    %c0_i32_1 = arith.constant 0 : i32
    return %c0_i32, %c0_i32_0 : i32, i32
  }
  func.func @transform_5(%arg0: i32) -> (i32, i32) {
    %c0_i32 = arith.constant 0 : i32
    %c0_i32_0 = arith.constant 0 : i32
    %c0_i32_1 = arith.constant 0 : i32
    return %c0_i32, %c0_i32_0 : i32, i32
  }
  func.func @transform_6(%arg0: i32) -> (i32, i32) {
    %c0_i32 = arith.constant 0 : i32
    %c0_i32_0 = arith.constant 0 : i32
    %c0_i32_1 = arith.constant 0 : i32
    return %c0_i32, %c0_i32_0 : i32, i32
  }
  func.func @transform_7(%arg0: i32) -> (i32, i32) {
    %c0_i32 = arith.constant 0 : i32
    %c0_i32_0 = arith.constant 0 : i32
    %c0_i32_1 = arith.constant 0 : i32
    return %c0_i32, %c0_i32_0 : i32, i32
  }
  func.func @transform_8(%arg0: i32) -> i32 {
    %c0_i32 = arith.constant 0 : i32
    %c0_i32_0 = arith.constant 0 : i32
    return %c0_i32 : i32
  }
  func.func @transform_9(%arg0: i32) -> (i32, i32) {
    %c0_i32 = arith.constant 0 : i32
    %c0_i32_0 = arith.constant 0 : i32
    %c0_i32_1 = arith.constant 0 : i32
    return %c0_i32, %c0_i32_0 : i32, i32
  }
  func.func @transform_10(%arg0: i32) -> (i32, i32) {
    %c0_i32 = arith.constant 0 : i32
    %c0_i32_0 = arith.constant 0 : i32
    %c0_i32_1 = arith.constant 0 : i32
    return %c0_i32, %c0_i32_0 : i32, i32
  }
  func.func @transform_11(%arg0: i32) -> (i32, i32) {
    %c0_i32 = arith.constant 0 : i32
    %c0_i32_0 = arith.constant 0 : i32
    return %arg0, %c0_i32 : i32, i32
  }
}

</mosaic_0001>

<llo_original>
// kernel: tpu_custom_call.1
$region0: #{tpu_custom_call.1}
  #allocation0 [shape = 'u32[]', space=smem, size = 0x4, offset = 0x4, fixed_abs, tag = 'smem constant byte address 0x4 - core index']
  #allocation1 [shape = 'u32[144,128]{1,0:T(1,128)}', space=vmem, size = 0x12000, scoped, tag = 'internal scratch']
  #allocation2 [shape = 'f32[1]{0:T(128)S(6)}', space=smem, size = 0x200, scoped, tag = 'scoped memory for tpu_custom_call.1']
  %s0 = inlined_call_operand.vmem [shape: f32[2,8,128], index: 0, kind: input, shape index: {}]
  %s1 = inlined_call_operand.vmem [shape: f32[2,8], index: 1, kind: input, shape index: {}]
  %s2 = inlined_call_operand.vmem [shape: f32[2,8], index: 2, kind: input, shape index: {}]
  %s3 = inlined_call_operand.vmem [shape: f32[128,32], index: 3, kind: input, shape index: {}]
  %s4 = inlined_call_operand.vmem [shape: f32[1,32], index: 4, kind: input, shape index: {}]
  %s5 = inlined_call_operand.vmem [shape: f32[1,32], index: 5, kind: input, shape index: {}]
  %s6 = inlined_call_operand.vmem [shape: f32[1,32], index: 6, kind: input, shape index: {}]
  %s7 = inlined_call_operand.vmem [shape: f32[1,32], index: 7, kind: input, shape index: {}]
  %s8 = inlined_call_operand.<no memory space> [shape: f32[1], index: 8, kind: input, shape index: {}]
  %s9 = inlined_call_operand.vmem [shape: f32[128,128], index: 9, kind: input, shape index: {}]
  %s10 = inlined_call_operand.vmem [shape: f32[1,128], index: 10, kind: input, shape index: {}]
  %s11 = inlined_call_operand.hbm [shape: f32[2,128], index: 11, kind: output, shape index: {}]
  %s12 = sld [smem:[#allocation0]]
  $region54: #{tpu_custom_call.1} parent=0
    _
  %s14 = ssub.s32 1, %s12
  %s15 = scalar_select 0, %s14, %s12
  %16 = sst [smem:[#allocation2]] %s8
  $region1: #{tpu_custom_call.1} parent=0
    #allocation3 [shape = 'u8[1024]{0}', space=vmem, size = 0x400, scoped, tag = 'output window, operand 0, single buffered']
    #allocation4 [shape = 's32[1]{0}', space=sflag, size = 0x4, scoped, tag = 'scoped memory for tpu_custom_call.1']
    %17 = vsyncpa [#allocation4], 0
    // Predicated region
    $region2: #{tpu_custom_call.1} parent=1 // pred_check
      _
    $region3: #{tpu_custom_call.1} parent=1 // pred_check_branch
      %19 = sbr.rel (0) target = $region5
    $region4: #{tpu_custom_call.1} parent=1 // pred_region
      _
    $region5: #{tpu_custom_call.1} parent=1 // pred_fallthru
      _
    // Predicated region
    $region6: #{tpu_custom_call.1} parent=1 // pred_check
      _
    $region7: #{tpu_custom_call.1} parent=1 // pred_check_branch
      %21 = sbr.rel (0) target = $region9
    $region8: #{tpu_custom_call.1} parent=1 // pred_region
      _
    $region9: #{tpu_custom_call.1} parent=1 // pred_fallthru
      _
    // Predicated region
    $region10: #{tpu_custom_call.1} parent=1 // pred_check
      _
    $region11: #{tpu_custom_call.1} parent=1 // pred_check_branch
      %23 = sbr.rel (0) target = $region13
    $region12: #{tpu_custom_call.1} parent=1 // pred_region
      _
    $region13: #{tpu_custom_call.1} parent=1 // pred_fallthru
      _
    // Predicated region
    $region14: #{tpu_custom_call.1} parent=1 // pred_check
      _
    $region15: #{tpu_custom_call.1} parent=1 // pred_check_branch
      %25 = sbr.rel (0) target = $region17
    $region16: #{tpu_custom_call.1} parent=1 // pred_region
      _
    $region17: #{tpu_custom_call.1} parent=1 // pred_fallthru
      _
    // Predicated region
    $region18: #{tpu_custom_call.1} parent=1 // pred_check
      _
    $region19: #{tpu_custom_call.1} parent=1 // pred_check_branch
      %27 = sbr.rel (0) target = $region21
    $region20: #{tpu_custom_call.1} parent=1 // pred_region
      _
    $region21: #{tpu_custom_call.1} parent=1 // pred_fallthru
      _
    // Predicated region
    $region22: #{tpu_custom_call.1} parent=1 // pred_check
      _
    $region23: #{tpu_custom_call.1} parent=1 // pred_check_branch
      %29 = sbr.rel (0) target = $region25
    $region24: #{tpu_custom_call.1} parent=1 // pred_region
      _
    $region25: #{tpu_custom_call.1} parent=1 // pred_fallthru
      _
    // Predicated region
    $region26: #{tpu_custom_call.1} parent=1 // pred_check
      _
    $region27: #{tpu_custom_call.1} parent=1 // pred_check_branch
      %31 = sbr.rel (0) target = $region29
    $region28: #{tpu_custom_call.1} parent=1 // pred_region
      _
    $region29: #{tpu_custom_call.1} parent=1 // pred_fallthru
      _
    // Predicated region
    $region30: #{tpu_custom_call.1} parent=1 // pred_check
      _
    $region31: #{tpu_custom_call.1} parent=1 // pred_check_branch
      %33 = sbr.rel (0) target = $region33
    $region32: #{tpu_custom_call.1} parent=1 // pred_region
      _
    $region33: #{tpu_custom_call.1} parent=1 // pred_fallthru
      _
    // Predicated region
    $region34: #{tpu_custom_call.1} parent=1 // pred_check
      _
    $region35: #{tpu_custom_call.1} parent=1 // pred_check_branch
      %35 = sbr.rel (0) target = $region37
    $region36: #{tpu_custom_call.1} parent=1 // pred_region
      _
    $region37: #{tpu_custom_call.1} parent=1 // pred_fallthru
      _
    // Predicated region
    $region38: #{tpu_custom_call.1} parent=1 // pred_check
      _
    $region39: #{tpu_custom_call.1} parent=1 // pred_check_branch
      %37 = sbr.rel (0) target = $region41
    $region40: #{tpu_custom_call.1} parent=1 // pred_region
      _
    $region41: #{tpu_custom_call.1} parent=1 // pred_fallthru
      _
    // Predicated region
    $region42: #{tpu_custom_call.1} parent=1 // pred_check
      _
    $region43: #{tpu_custom_call.1} parent=1 // pred_check_branch
      %39 = sbr.rel (0) target = $region45
    $region44: #{tpu_custom_call.1} parent=1 // pred_region
      _
    $region45: #{tpu_custom_call.1} parent=1 // pred_fallthru
      _
    %v40 = vld [vmem:[%s0] sm:$0xff]
    %v41 = vld [vmem:[%s0 + $0x8] sm:$0xff]
    %v42 = vld [vmem:[%s3] sm:$0xff]
    %v43 = vld [vmem:[%s3 + $0x8] sm:$0xff]
    %v44 = vld [vmem:[%s3 + $0x10] sm:$0xff]
    %v45 = vld [vmem:[%s3 + $0x18] sm:$0xff]
    %v46 = vld [vmem:[%s3 + $0x20] sm:$0xff]
    %v47 = vld [vmem:[%s3 + $0x28] sm:$0xff]
    %v48 = vld [vmem:[%s3 + $0x30] sm:$0xff]
    %v49 = vld [vmem:[%s3 + $0x38] sm:$0xff]
    %v50 = vld [vmem:[%s3 + $0x40] sm:$0xff]
    %v51 = vld [vmem:[%s3 + $0x48] sm:$0xff]
    %v52 = vld [vmem:[%s3 + $0x50] sm:$0xff]
    %v53 = vld [vmem:[%s3 + $0x58] sm:$0xff]
    %v54 = vld [vmem:[%s3 + $0x60] sm:$0xff]
    %v55 = vld [vmem:[%s3 + $0x68] sm:$0xff]
    %v56 = vld [vmem:[%s3 + $0x70] sm:$0xff]
    %v57 = vld [vmem:[%s3 + $0x78] sm:$0xff]
    %58 = vmatprep.subr.mxu0 0.0
    %59 = vmatpush1.msra.mxu0 %v42
    %60 = vmatprep.subr.mxu0 0.0
    %61 = vmatpush1.msra.mxu0 %v43
    %62 = vmatprep.subr.mxu0 0.0
    %63 = vmatpush1.msra.mxu0 %v44
    %64 = vmatprep.subr.mxu0 0.0
    %65 = vmatpush1.msra.mxu0 %v45
    %66 = vmatprep.subr.mxu0 0.0
    %67 = vmatpush1.msra.mxu0 %v46
    %68 = vmatprep.subr.mxu0 0.0
    %69 = vmatpush1.msra.mxu0 %v47
    %70 = vmatprep.subr.mxu0 0.0
    %71 = vmatpush1.msra.mxu0 %v48
    %72 = vmatprep.subr.mxu0 0.0
    %73 = vmatpush1.msra.mxu0 %v49
    %74 = vmatprep.subr.mxu0 0.0
    %75 = vmatpush1.msra.mxu0 %v50
    %76 = vmatprep.subr.mxu0 0.0
    %77 = vmatpush1.msra.mxu0 %v51
    %78 = vmatprep.subr.mxu0 0.0
    %79 = vmatpush1.msra.mxu0 %v52
    %80 = vmatprep.subr.mxu0 0.0
    %81 = vmatpush1.msra.mxu0 %v53
    %82 = vmatprep.subr.mxu0 0.0
    %83 = vmatpush1.msra.mxu0 %v54
    %84 = vmatprep.subr.mxu0 0.0
    %85 = vmatpush1.msra.mxu0 %v55
    %86 = vmatprep.subr.mxu0 0.0
    %87 = vmatpush1.msra.mxu0 %v56
    %88 = vmatprep.subr.mxu0 0.0
    %89 = vmatpush1.msra.mxu0 %v57
    %90 = vmatprep.subr.mxu0 0.0
    %91 = vmatpush1.msra.mxu0 0.0
    %92 = vmatprep.subr.mxu0 0.0
    %93 = vmatpush1.msra.mxu0 0.0
    %94 = vmatprep.subr.mxu0 0.0
    %95 = vmatpush1.msra.mxu0 0.0
    %96 = vmatprep.subr.mxu0 0.0
    %97 = vmatpush1.msra.mxu0 0.0
    %98 = vmatprep.subr.mxu0 0.0
    %99 = vmatpush1.msra.mxu0 0.0
    %100 = vmatprep.subr.mxu0 0.0
    %101 = vmatpush1.msra.mxu0 0.0
    %102 = vmatprep.subr.mxu0 0.0
    %103 = vmatpush1.msra.mxu0 0.0
    %104 = vmatprep.subr.mxu0 0.0
    %105 = vmatpush1.msra.mxu0 0.0
    %106 = vmatprep.subr.mxu0 0.0
    %107 = vmatpush1.msra.mxu0 0.0
    %108 = vmatprep.subr.mxu0 0.0
    %109 = vmatpush1.msra.mxu0 0.0
    %110 = vmatprep.subr.mxu0 0.0
    %111 = vmatpush1.msra.mxu0 0.0
    %112 = vmatprep.subr.mxu0 0.0
    %113 = vmatpush1.msra.mxu0 0.0
    %114 = vmatprep.subr.mxu0 0.0
    %115 = vmatpush1.msra.mxu0 0.0
    %116 = vmatprep.subr.mxu0 0.0
    %117 = vmatpush1.msra.mxu0 0.0
    %118 = vmatprep.subr.mxu0 0.0
    %119 = vmatpush1.msra.mxu0 0.0
    %120 = vmatprep.subr.mxu0 0.0
    %121 = vmatpush1.msra.mxu0 0.0
    %122 = vmatprep.mubr.f32.mxu0 0.0
    %123 = vmatmul.mubr.f32.gmra.mrb[0].mxu0 %v40
    %v124 = vpop.f32.mrb[0].mxu0
    %v125 = vadd.f32 0.0, %v124
    %v126 = vpop.f32.mrb[0].mxu0
    %127 = vmatprep.mubr.f32.mxu0 0.0
    %128 = vmatmul.mubr.f32.gmra.mrb[0].mxu0 %v41
    %v129 = vpop.f32.mrb[0].mxu0
    %v130 = vadd.f32 0.0, %v129
    %v131 = vpop.f32.mrb[0].mxu0
    %132 = vdwg.mxu0
    %v133 = vld [vmem:[%s4] sm:$0x1]
    %v135 = vlaneseq
    %v136 = vshrl.u32 %v135, 7
    %v137 = vsub.s32 0, %v136
    %v138 = vrot.slane %v133, %v137
    %v140 = vadd.f32 %v125, %v138
    %v141 = vadd.f32 %v130, %v138
    %vm142 = vcmask 261120
    %v143 = vsel %vm142, %v140, 0.0
    %144 = vadd.xlane.f32.xlu0 %v143
    %v145 = vpop.xlane.xlu0 %144
    %v146 = vsel %vm142, %v141, 0.0
    %147 = vadd.xlane.f32.xlu0 %v146
    %v148 = vpop.xlane.xlu0 %147
    %v149 = vrcp.pop 32.0
    %v150 = vmul.f32 %v145, %v149
    %v151 = vmul.f32 %v148, %v149
    %v152 = vsub.f32 %v140, %v150
    %v153 = vsub.f32 %v141, %v151
    %v154 = vmul.f32 %v152, %v152
    %v155 = vmul.f32 %v153, %v153
    %v156 = vsel %vm142, %v154, 0.0
    %157 = vadd.xlane.f32.xlu0 %v156
    %v158 = vpop.xlane.xlu0 %157
    %v159 = vsel %vm142, %v155, 0.0
    %160 = vadd.xlane.f32.xlu0 %v159
    %v161 = vpop.xlane.xlu0 %160
    %v162 = vmul.f32 %v158, %v149
    %v163 = vmul.f32 %v161, %v149
    %v164 = vadd.f32 %v162, 1e-05
    %v165 = vadd.f32 %v163, 1e-05
    %v166 = vrsqrt.pop %v164
    %v167 = vrsqrt.pop %v165
    %v168 = vmul.f32 %v152, %v166
    %v169 = vmul.f32 %v153, %v167
    %v170 = vld [vmem:[%s5] sm:$0x1]
    %v172 = vlaneseq
    %v173 = vshrl.u32 %v172, 7
    %v174 = vsub.s32 0, %v173
    %v175 = vrot.slane %v170, %v174
    %v177 = vmul.f32 %v168, %v175
    %v178 = vmul.f32 %v169, %v175
    %v179 = vld [vmem:[%s6] sm:$0x1]
    %v181 = vlaneseq
    %v182 = vshrl.u32 %v181, 7
    %v183 = vsub.s32 0, %v182
    %v184 = vrot.slane %v179, %v183
    %v186 = vadd.f32 %v177, %v184
    %v187 = vadd.f32 %v178, %v184
    %v188 = vmul.f32 %v186, %v186
    %v189 = vmul.f32 %v187, %v187
    %v190 = vmul.f32 %v188, %v186
    %v191 = vmul.f32 %v189, %v187
    %v192 = vmul.f32 %v186, 0.5
    %v193 = vmul.f32 %v187, 0.5
    %v194 = vmul.f32 %v190, 0.044715
    %v195 = vmul.f32 %v191, 0.044715
    %v196 = vadd.f32 %v186, %v194
    %v197 = vadd.f32 %v187, %v195
    %v198 = vmul.f32 %v196, 0.7978846
    %v199 = vmul.f32 %v197, 0.7978846
    %v200 = vtanh.pop %v198
    %v201 = vtanh.pop %v199
    %v202 = vadd.f32 %v200, 1.0
    %v203 = vadd.f32 %v201, 1.0
    %v204 = vmul.f32 %v192, %v202
    %v205 = vmul.f32 %v193, %v203
    %v206 = vld [vmem:[%s7] sm:$0x1]
    %v208 = vlaneseq
    %v209 = vshrl.u32 %v208, 7
    %v210 = vsub.s32 0, %v209
    %v211 = vrot.slane %v206, %v210
    %v213 = vmul.f32 %v204, %v211
    %v214 = vmul.f32 %v205, %v211
    %v215 = vsel %vm142, %v213, 0.0
    %216 = vadd.xlane.f32.xlu0 %v215
    %v217 = vpop.xlane.xlu0 %216
    %v218 = vsel %vm142, %v214, 0.0
    %219 = vadd.xlane.f32.xlu0 %v218
    %v220 = vpop.xlane.xlu0 %219
    %s221 = sld [smem:[#allocation2]]
    %v222 = vstv %s221
    %v223 = vadd.f32 %v217, %v222
    %v224 = vadd.f32 %v220, %v222
    %v225 = vld [vmem:[%s2] sm:$0x3]
    %v227 = vlaneseq
    %v228 = vshrl.u32 %v227, 7
    %v229 = vsub.s32 0, %v228
    %v230 = vrot.slane %v225, %v229
    %232 = vbcast.lane.b32.xlu0 %v230, 256
    %v233 = vpop.permute.xlu0 %232
    %v234 = vlaneseq
    %v235 = vshrl.u32 %v234, 7
    %v236 = vsub.s32 1, %v235
    %v237 = vrot.slane %v225, %v236
    %239 = vbcast.lane.b32.xlu0 %v237, 256
    %v240 = vpop.permute.xlu0 %239
    %v243 = vadd.f32 %v223, %v233
    %v244 = vadd.f32 %v224, %v240
    %247 = vset.pattern.permute.xlu0 0
    %248 = vperm.xlu0 %247, %v243
    %v249 = vpop.permute.xlu0 %248
    %250 = vset.pattern.permute.xlu0 0
    %251 = vperm.xlu0 %250, %v244
    %v252 = vpop.permute.xlu0 %251
    %v253 = vlaneseq
    %v254 = vand.u32 %v253, 127
    %v255 = vlaneseq
    %v256 = vshrl.u32 %v255, 7
    %v257 = vsub.s32 %v254, %v256
    %v258 = vrot.slane %v249, %v257
    %v259 = vlaneseq
    %v260 = vshrl.u32 %v259, 7
    %v261 = vsub.s32 %v254, %v260
    %v262 = vrot.slane %v252, %v261
    %vm263 = vcmask 1041409
    %v264 = vsel %vm263, %v262, %v258
    %vm266 = vcmask 58368
    %v267 = vsel %vm266, %v264, -inf
    %268 = vmax.xlane.f32.xlu0 %v267
    %v269 = vpop.xlane.xlu0 %268
    %v271 = vlaneseq
    %v272 = vshrl.u32 %v271, 7
    %v273 = vsub.s32 0, %v272
    %v274 = vrot.slane %v269, %v273
    %v275 = vlaneseq
    %v276 = vshrl.u32 %v275, 7
    %v277 = vsub.s32 1, %v276
    %v278 = vrot.slane %v269, %v277
    %v281 = vsub.f32 %v243, %v274
    %v282 = vsub.f32 %v244, %v278
    %v283 = vmul.f32 %v281, 1.442695
    %v284 = vpow.pop %v283
    %v285 = vmul.f32 %v282, 1.442695
    %v286 = vpow.pop %v285
    %289 = vset.pattern.permute.xlu0 0
    %290 = vperm.xlu0 %289, %v284
    %v291 = vpop.permute.xlu0 %290
    %292 = vset.pattern.permute.xlu0 0
    %293 = vperm.xlu0 %292, %v286
    %v294 = vpop.permute.xlu0 %293
    %v295 = vlaneseq
    %v296 = vshrl.u32 %v295, 7
    %v297 = vsub.s32 %v254, %v296
    %v298 = vrot.slane %v291, %v297
    %v299 = vlaneseq
    %v300 = vshrl.u32 %v299, 7
    %v301 = vsub.s32 %v254, %v300
    %v302 = vrot.slane %v294, %v301
    %v303 = vsel %vm263, %v302, %v298
    %v305 = vsel %vm266, %v303, 0.0
    %306 = vadd.xlane.f32.xlu0 %v305
    %v307 = vpop.xlane.xlu0 %306
    %v308 = vrcp.pop %v307
    %v310 = vlaneseq
    %v311 = vshrl.u32 %v310, 7
    %v312 = vsub.s32 0, %v311
    %v313 = vrot.slane %v308, %v312
    %v314 = vlaneseq
    %v315 = vshrl.u32 %v314, 7
    %v316 = vsub.s32 1, %v315
    %v317 = vrot.slane %v308, %v316
    %v320 = vmul.f32 %v284, %v313
    %v321 = vmul.f32 %v286, %v317
    %v322 = vld [vmem:[%s1] sm:$0x3]
    %v324 = vlaneseq
    %v325 = vshrl.u32 %v324, 7
    %v326 = vsub.s32 0, %v325
    %v327 = vrot.slane %v322, %v326
    %329 = vbcast.lane.b32.xlu0 %v327, 256
    %v330 = vpop.permute.xlu0 %329
    %v331 = vlaneseq
    %v332 = vshrl.u32 %v331, 7
    %v333 = vsub.s32 1, %v332
    %v334 = vrot.slane %v322, %v333
    %336 = vbcast.lane.b32.xlu0 %v334, 256
    %v337 = vpop.permute.xlu0 %336
    %v340 = vmul.f32 %v320, %v330
    %v341 = vmul.f32 %v321, %v337
    %344 = vset.pattern.permute.xlu0 0
    %345 = vperm.xlu0 %344, %v340
    %v346 = vpop.permute.xlu0 %345
    %347 = vset.pattern.permute.xlu0 0
    %348 = vperm.xlu0 %347, %v341
    %v349 = vpop.permute.xlu0 %348
    %v350 = vlaneseq
    %v351 = vshrl.u32 %v350, 7
    %v352 = vsub.s32 %v254, %v351
    %v353 = vrot.slane %v346, %v352
    %v354 = vlaneseq
    %v355 = vshrl.u32 %v354, 7
    %v356 = vsub.s32 %v254, %v355
    %v357 = vrot.slane %v349, %v356
    %v358 = vsel %vm263, %v357, %v353
    %v360 = vsel %vm266, %v358, 0.0
    %361 = vadd.xlane.f32.xlu0 %v360
    %v362 = vpop.xlane.xlu0 %361
    %v363 = vmax.f32 %v362, 1e-10
    %v365 = vlaneseq
    %v366 = vshrl.u32 %v365, 7
    %v367 = vsub.s32 0, %v366
    %v368 = vrot.slane %v363, %v367
    %v369 = vlaneseq
    %v370 = vshrl.u32 %v369, 7
    %v371 = vsub.s32 1, %v370
    %v372 = vrot.slane %v363, %v371
    %v375 = vrcp.pop %v368
    %v376 = vmul.f32 %v340, %v375
    %v377 = vrcp.pop %v372
    %v378 = vmul.f32 %v341, %v377
    %380 = vset.pattern.permute.xlu0 0
    %381 = vperm.xlu0 %380, %v376
    %v382 = vpop.permute.xlu0 %381
    %385 = vset.pattern.permute.xlu0 0
    %386 = vperm.xlu0 %385, %v378
    %v387 = vpop.permute.xlu0 %386
    %v389 = vmul.f32 %v40, %v382
    %v390 = vmul.f32 %v41, %v387
    %v391 = vrot.slane %v389, 4
    %v392 = vadd.f32 %v389, %v391
    %v393 = vrot.slane %v392, 2
    %v394 = vadd.f32 %v392, %v393
    %v395 = vrot.slane %v394, 1
    %v396 = vadd.f32 %v394, %v395
    %v397 = vrot.slane %v390, 4
    %v398 = vadd.f32 %v390, %v397
    %v399 = vrot.slane %v398, 2
    %v400 = vadd.f32 %v398, %v399
    %v401 = vrot.slane %v400, 1
    %v402 = vadd.f32 %v400, %v401
    %v403 = vld [vmem:[%s9] sm:$0xff]
    %v404 = vld [vmem:[%s9 + $0x8] sm:$0xff]
    %v405 = vld [vmem:[%s9 + $0x10] sm:$0xff]
    %v406 = vld [vmem:[%s9 + $0x18] sm:$0xff]
    %v407 = vld [vmem:[%s9 + $0x20] sm:$0xff]
    %v408 = vld [vmem:[%s9 + $0x28] sm:$0xff]
    %v409 = vld [vmem:[%s9 + $0x30] sm:$0xff]
    %v410 = vld [vmem:[%s9 + $0x38] sm:$0xff]
    %v411 = vld [vmem:[%s9 + $0x40] sm:$0xff]
    %v412 = vld [vmem:[%s9 + $0x48] sm:$0xff]
    %v413 = vld [vmem:[%s9 + $0x50] sm:$0xff]
    %v414 = vld [vmem:[%s9 + $0x58] sm:$0xff]
    %v415 = vld [vmem:[%s9 + $0x60] sm:$0xff]
    %v416 = vld [vmem:[%s9 + $0x68] sm:$0xff]
    %v417 = vld [vmem:[%s9 + $0x70] sm:$0xff]
    %v418 = vld [vmem:[%s9 + $0x78] sm:$0xff]
    %v419 = vld [vmem:[%s10] sm:$0x1]
    %v421 = vlaneseq
    %v422 = vshrl.u32 %v421, 7
    %v423 = vsub.s32 0, %v422
    %v424 = vrot.slane %v419, %v423
    %v428 = vsel %vm263, %v402, %v396
    %430 = vmatprep.subr.mxu0 0.0
    %431 = vmatpush1.msra.mxu0 %v403
    %432 = vmatprep.subr.mxu0 0.0
    %433 = vmatpush1.msra.mxu0 %v404
    %434 = vmatprep.subr.mxu0 0.0
    %435 = vmatpush1.msra.mxu0 %v405
    %436 = vmatprep.subr.mxu0 0.0
    %437 = vmatpush1.msra.mxu0 %v406
    %438 = vmatprep.subr.mxu0 0.0
    %439 = vmatpush1.msra.mxu0 %v407
    %440 = vmatprep.subr.mxu0 0.0
    %441 = vmatpush1.msra.mxu0 %v408
    %442 = vmatprep.subr.mxu0 0.0
    %443 = vmatpush1.msra.mxu0 %v409
    %444 = vmatprep.subr.mxu0 0.0
    %445 = vmatpush1.msra.mxu0 %v410
    %446 = vmatprep.subr.mxu0 0.0
    %447 = vmatpush1.msra.mxu0 %v411
    %448 = vmatprep.subr.mxu0 0.0
    %449 = vmatpush1.msra.mxu0 %v412
    %450 = vmatprep.subr.mxu0 0.0
    %451 = vmatpush1.msra.mxu0 %v413
    %452 = vmatprep.subr.mxu0 0.0
    %453 = vmatpush1.msra.mxu0 %v414
    %454 = vmatprep.subr.mxu0 0.0
    %455 = vmatpush1.msra.mxu0 %v415
    %456 = vmatprep.subr.mxu0 0.0
    %457 = vmatpush1.msra.mxu0 %v416
    %458 = vmatprep.subr.mxu0 0.0
    %459 = vmatpush1.msra.mxu0 %v417
    %460 = vmatprep.subr.mxu0 0.0
    %461 = vmatpush1.msra.mxu0 %v418
    %462 = vmatprep.subr.mxu0 0.0
    %463 = vmatpush1.msra.mxu0 0.0
    %464 = vmatprep.subr.mxu0 0.0
    %465 = vmatpush1.msra.mxu0 0.0
    %466 = vmatprep.subr.mxu0 0.0
    %467 = vmatpush1.msra.mxu0 0.0
    %468 = vmatprep.subr.mxu0 0.0
    %469 = vmatpush1.msra.mxu0 0.0
    %470 = vmatprep.subr.mxu0 0.0
    %471 = vmatpush1.msra.mxu0 0.0
    %472 = vmatprep.subr.mxu0 0.0
    %473 = vmatpush1.msra.mxu0 0.0
    %474 = vmatprep.subr.mxu0 0.0
    %475 = vmatpush1.msra.mxu0 0.0
    %476 = vmatprep.subr.mxu0 0.0
    %477 = vmatpush1.msra.mxu0 0.0
    %478 = vmatprep.subr.mxu0 0.0
    %479 = vmatpush1.msra.mxu0 0.0
    %480 = vmatprep.subr.mxu0 0.0
    %481 = vmatpush1.msra.mxu0 0.0
    %482 = vmatprep.subr.mxu0 0.0
    %483 = vmatpush1.msra.mxu0 0.0
    %484 = vmatprep.subr.mxu0 0.0
    %485 = vmatpush1.msra.mxu0 0.0
    %486 = vmatprep.subr.mxu0 0.0
    %487 = vmatpush1.msra.mxu0 0.0
    %488 = vmatprep.subr.mxu0 0.0
    %489 = vmatpush1.msra.mxu0 0.0
    %490 = vmatprep.subr.mxu0 0.0
    %491 = vmatpush1.msra.mxu0 0.0
    %492 = vmatprep.subr.mxu0 0.0
    %493 = vmatpush1.msra.mxu0 0.0
    %494 = vmatprep.mubr.f32.mxu0 0.0
    %495 = vmatmul.mubr.f32.gmra.mrb[0].mxu0 %v428
    %v496 = vpop.f32.mrb[0].mxu0
    %v497 = vadd.f32 %v424, %v496
    %v498 = vpop.f32.mrb[0].mxu0
    %499 = vdwg.mxu0
    %500 = vst [vmem:[#allocation3] sm:$0x3] %v497
    // Predicated region
    $region46: #{tpu_custom_call.1} parent=1 // pred_check
      _
    $region47: #{tpu_custom_call.1} parent=1 // pred_check_branch
      %502 = sbr.rel (0) target = $region49
    $region48: #{tpu_custom_call.1} parent=1 // pred_region
      %s504 = ssub.s32 32, 32
      %505 = vsyncadd [#allocation4], %s504
      %s507 = sshll.u32 [#allocation3], 4
      %s508 = int_to_ptr.vmem [resolvable:$true] %s507
      %510 = dma.vmem_to_hbm [thread:$0]  %s508, 32, %s11, [#allocation4]
    $region49: #{tpu_custom_call.1} parent=1 // pred_fallthru
      _
    // Predicated region
    $region50: #{tpu_custom_call.1} parent=1 // pred_check
      _
    $region51: #{tpu_custom_call.1} parent=1 // pred_check_branch
      %512 = sbr.rel (0) target = $region53
    $region52: #{tpu_custom_call.1} parent=1 // pred_region
      %513 = dma.done [#allocation4], 32
    $region53: #{tpu_custom_call.1} parent=1 // pred_fallthru
      _
    %514 = vsyncpa [#allocation4], 1

// kernel: tpu_custom_call.1
$region0: #{tpu_custom_call.1}
  #allocation0 [shape = 'u32[]', space=smem, size = 0x4, offset = 0x4, fixed_abs, tag = 'smem constant byte address 0x4 - core index']
  #allocation1 [shape = 'u32[144,128]{1,0:T(1,128)}', space=vmem, size = 0x12000, scoped, tag = 'internal scratch']
  #allocation2 [shape = 'f32[1]{0:T(128)S(6)}', space=smem, size = 0x200, scoped, tag = 'scoped memory for tpu_custom_call.1']
  %s0 = inlined_call_operand.vmem [shape: f32[2,8,128], index: 0, kind: input, shape index: {}]
  %s1 = inlined_call_operand.vmem [shape: f32[2,8], index: 1, kind: input, shape index: {}]
  %s2 = inlined_call_operand.vmem [shape: f32[2,8], index: 2, kind: input, shape index: {}]
  %s3 = inlined_call_operand.vmem [shape: f32[128,32], index: 3, kind: input, shape index: {}]
  %s4 = inlined_call_operand.vmem [shape: f32[1,32], index: 4, kind: input, shape index: {}]
  %s5 = inlined_call_operand.vmem [shape: f32[1,32], index: 5, kind: input, shape index: {}]
  %s6 = inlined_call_operand.vmem [shape: f32[1,32], index: 6, kind: input, shape index: {}]
  %s7 = inlined_call_operand.vmem [shape: f32[1,32], index: 7, kind: input, shape index: {}]
  %s8 = inlined_call_operand.<no memory space> [shape: f32[1], index: 8, kind: input, shape index: {}]
  %s9 = inlined_call_operand.vmem [shape: f32[128,128], index: 9, kind: input, shape index: {}]
  %s10 = inlined_call_operand.vmem [shape: f32[1,128], index: 10, kind: input, shape index: {}]
  %s11 = inlined_call_operand.hbm [shape: f32[2,128], index: 11, kind: output, shape index: {}]
  %s12 = sld [smem:[#allocation0]]
  $region54: #{tpu_custom_call.1} parent=0
    _
  %s14 = ssub.s32 1, %s12
  %s15 = scalar_select 0, %s14, %s12
  %16 = sst [smem:[#allocation2]] %s8
  $region1: #{tpu_custom_call.1} parent=0
    #allocation3 [shape = 'u8[1024]{0}', space=vmem, size = 0x400, scoped, tag = 'output window, operand 0, single buffered']
    #allocation4 [shape = 's32[1]{0}', space=sflag, size = 0x4, scoped, tag = 'scoped memory for tpu_custom_call.1']
    %17 = vsyncpa [#allocation4], 0
    // Predicated region
    $region2: #{tpu_custom_call.1} parent=1 // pred_check
      _
    $region3: #{tpu_custom_call.1} parent=1 // pred_check_branch
      %19 = sbr.rel (0) target = $region5
    $region4: #{tpu_custom_call.1} parent=1 // pred_region
      _
    $region5: #{tpu_custom_call.1} parent=1 // pred_fallthru
      _
    // Predicated region
    $region6: #{tpu_custom_call.1} parent=1 // pred_check
      _
    $region7: #{tpu_custom_call.1} parent=1 // pred_check_branch
      %21 = sbr.rel (0) target = $region9
    $region8: #{tpu_custom_call.1} parent=1 // pred_region
      _
    $region9: #{tpu_custom_call.1} parent=1 // pred_fallthru
      _
    // Predicated region
    $region10: #{tpu_custom_call.1} parent=1 // pred_check
      _
    $region11: #{tpu_custom_call.1} parent=1 // pred_check_branch
      %23 = sbr.rel (0) target = $region13
    $region12: #{tpu_custom_call.1} parent=1 // pred_region
      _
    $region13: #{tpu_custom_call.1} parent=1 // pred_fallthru
      _
    // Predicated region
    $region14: #{tpu_custom_call.1} parent=1 // pred_check
      _
    $region15: #{tpu_custom_call.1} parent=1 // pred_check_branch
      %25 = sbr.rel (0) target = $region17
    $region16: #{tpu_custom_call.1} parent=1 // pred_region
      _
    $region17: #{tpu_custom_call.1} parent=1 // pred_fallthru
      _
    // Predicated region
    $region18: #{tpu_custom_call.1} parent=1 // pred_check
      _
    $region19: #{tpu_custom_call.1} parent=1 // pred_check_branch
      %27 = sbr.rel (0) target = $region21
    $region20: #{tpu_custom_call.1} parent=1 // pred_region
      _
    $region21: #{tpu_custom_call.1} parent=1 // pred_fallthru
      _
    // Predicated region
    $region22: #{tpu_custom_call.1} parent=1 // pred_check
      _
    $region23: #{tpu_custom_call.1} parent=1 // pred_check_branch
      %29 = sbr.rel (0) target = $region25
    $region24: #{tpu_custom_call.1} parent=1 // pred_region
      _
    $region25: #{tpu_custom_call.1} parent=1 // pred_fallthru
      _
    // Predicated region
    $region26: #{tpu_custom_call.1} parent=1 // pred_check
      _
    $region27: #{tpu_custom_call.1} parent=1 // pred_check_branch
      %31 = sbr.rel (0) target = $region29
    $region28: #{tpu_custom_call.1} parent=1 // pred_region
      _
    $region29: #{tpu_custom_call.1} parent=1 // pred_fallthru
      _
    // Predicated region
    $region30: #{tpu_custom_call.1} parent=1 // pred_check
      _
    $region31: #{tpu_custom_call.1} parent=1 // pred_check_branch
      %33 = sbr.rel (0) target = $region33
    $region32: #{tpu_custom_call.1} parent=1 // pred_region
      _
    $region33: #{tpu_custom_call.1} parent=1 // pred_fallthru
      _
    // Predicated region
    $region34: #{tpu_custom_call.1} parent=1 // pred_check
      _
    $region35: #{tpu_custom_call.1} parent=1 // pred_check_branch
      %35 = sbr.rel (0) target = $region37
    $region36: #{tpu_custom_call.1} parent=1 // pred_region
      _
    $region37: #{tpu_custom_call.1} parent=1 // pred_fallthru
      _
    // Predicated region
    $region38: #{tpu_custom_call.1} parent=1 // pred_check
      _
    $region39: #{tpu_custom_call.1} parent=1 // pred_check_branch
      %37 = sbr.rel (0) target = $region41
    $region40: #{tpu_custom_call.1} parent=1 // pred_region
      _
    $region41: #{tpu_custom_call.1} parent=1 // pred_fallthru
      _
    // Predicated region
    $region42: #{tpu_custom_call.1} parent=1 // pred_check
      _
    $region43: #{tpu_custom_call.1} parent=1 // pred_check_branch
      %39 = sbr.rel (0) target = $region45
    $region44: #{tpu_custom_call.1} parent=1 // pred_region
      _
    $region45: #{tpu_custom_call.1} parent=1 // pred_fallthru
      _
    %v40 = vld [vmem:[%s0] sm:$0xff]
    %v41 = vld [vmem:[%s0 + $0x8] sm:$0xff]
    %v42 = vld [vmem:[%s3] sm:$0xff]
    %v43 = vld [vmem:[%s3 + $0x8] sm:$0xff]
    %v44 = vld [vmem:[%s3 + $0x10] sm:$0xff]
    %v45 = vld [vmem:[%s3 + $0x18] sm:$0xff]
    %v46 = vld [vmem:[%s3 + $0x20] sm:$0xff]
    %v47 = vld [vmem:[%s3 + $0x28] sm:$0xff]
    %v48 = vld [vmem:[%s3 + $0x30] sm:$0xff]
    %v49 = vld [vmem:[%s3 + $0x38] sm:$0xff]
    %v50 = vld [vmem:[%s3 + $0x40] sm:$0xff]
    %v51 = vld [vmem:[%s3 + $0x48] sm:$0xff]
    %v52 = vld [vmem:[%s3 + $0x50] sm:$0xff]
    %v53 = vld [vmem:[%s3 + $0x58] sm:$0xff]
    %v54 = vld [vmem:[%s3 + $0x60] sm:$0xff]
    %v55 = vld [vmem:[%s3 + $0x68] sm:$0xff]
    %v56 = vld [vmem:[%s3 + $0x70] sm:$0xff]
    %v57 = vld [vmem:[%s3 + $0x78] sm:$0xff]
    %58 = vmatprep.subr.mxu0 0.0
    %59 = vmatpush1.msra.mxu0 %v42
    %60 = vmatprep.subr.mxu0 0.0
    %61 = vmatpush1.msra.mxu0 %v43
    %62 = vmatprep.subr.mxu0 0.0
    %63 = vmatpush1.msra.mxu0 %v44
    %64 = vmatprep.subr.mxu0 0.0
    %65 = vmatpush1.msra.mxu0 %v45
    %66 = vmatprep.subr.mxu0 0.0
    %67 = vmatpush1.msra.mxu0 %v46
    %68 = vmatprep.subr.mxu0 0.0
    %69 = vmatpush1.msra.mxu0 %v47
    %70 = vmatprep.subr.mxu0 0.0
    %71 = vmatpush1.msra.mxu0 %v48
    %72 = vmatprep.subr.mxu0 0.0
    %73 = vmatpush1.msra.mxu0 %v49
    %74 = vmatprep.subr.mxu0 0.0
    %75 = vmatpush1.msra.mxu0 %v50
    %76 = vmatprep.subr.mxu0 0.0
    %77 = vmatpush1.msra.mxu0 %v51
    %78 = vmatprep.subr.mxu0 0.0
    %79 = vmatpush1.msra.mxu0 %v52
    %80 = vmatprep.subr.mxu0 0.0
    %81 = vmatpush1.msra.mxu0 %v53
    %82 = vmatprep.subr.mxu0 0.0
    %83 = vmatpush1.msra.mxu0 %v54
    %84 = vmatprep.subr.mxu0 0.0
    %85 = vmatpush1.msra.mxu0 %v55
    %86 = vmatprep.subr.mxu0 0.0
    %87 = vmatpush1.msra.mxu0 %v56
    %88 = vmatprep.subr.mxu0 0.0
    %89 = vmatpush1.msra.mxu0 %v57
    %90 = vmatprep.subr.mxu0 0.0
    %91 = vmatpush1.msra.mxu0 0.0
    %92 = vmatprep.subr.mxu0 0.0
    %93 = vmatpush1.msra.mxu0 0.0
    %94 = vmatprep.subr.mxu0 0.0
    %95 = vmatpush1.msra.mxu0 0.0
    %96 = vmatprep.subr.mxu0 0.0
    %97 = vmatpush1.msra.mxu0 0.0
    %98 = vmatprep.subr.mxu0 0.0
    %99 = vmatpush1.msra.mxu0 0.0
    %100 = vmatprep.subr.mxu0 0.0
    %101 = vmatpush1.msra.mxu0 0.0
    %102 = vmatprep.subr.mxu0 0.0
    %103 = vmatpush1.msra.mxu0 0.0
    %104 = vmatprep.subr.mxu0 0.0
    %105 = vmatpush1.msra.mxu0 0.0
    %106 = vmatprep.subr.mxu0 0.0
    %107 = vmatpush1.msra.mxu0 0.0
    %108 = vmatprep.subr.mxu0 0.0
    %109 = vmatpush1.msra.mxu0 0.0
    %110 = vmatprep.subr.mxu0 0.0
    %111 = vmatpush1.msra.mxu0 0.0
    %112 = vmatprep.subr.mxu0 0.0
    %113 = vmatpush1.msra.mxu0 0.0
    %114 = vmatprep.subr.mxu0 0.0
    %115 = vmatpush1.msra.mxu0 0.0
    %116 = vmatprep.subr.mxu0 0.0
    %117 = vmatpush1.msra.mxu0 0.0
    %118 = vmatprep.subr.mxu0 0.0
    %119 = vmatpush1.msra.mxu0 0.0
    %120 = vmatprep.subr.mxu0 0.0
    %121 = vmatpush1.msra.mxu0 0.0
    %122 = vmatprep.mubr.f32.mxu0 0.0
    %123 = vmatmul.mubr.f32.gmra.mrb[0].mxu0 %v40
    %v124 = vpop.f32.mrb[0].mxu0
    %v125 = vadd.f32 0.0, %v124
    %v126 = vpop.f32.mrb[0].mxu0
    %127 = vmatprep.mubr.f32.mxu0 0.0
    %128 = vmatmul.mubr.f32.gmra.mrb[0].mxu0 %v41
    %v129 = vpop.f32.mrb[0].mxu0
    %v130 = vadd.f32 0.0, %v129
    %v131 = vpop.f32.mrb[0].mxu0
    %132 = vdwg.mxu0
    %v133 = vld [vmem:[%s4] sm:$0x1]
    %v135 = vlaneseq
    %v136 = vshrl.u32 %v135, 7
    %v137 = vsub.s32 0, %v136
    %v138 = vrot.slane %v133, %v137
    %v140 = vadd.f32 %v125, %v138
    %v141 = vadd.f32 %v130, %v138
    %vm142 = vcmask 261120
    %v143 = vsel %vm142, %v140, 0.0
    %144 = vadd.xlane.f32.xlu0 %v143
    %v145 = vpop.xlane.xlu0 %144
    %v146 = vsel %vm142, %v141, 0.0
    %147 = vadd.xlane.f32.xlu0 %v146
    %v148 = vpop.xlane.xlu0 %147
    %v149 = vrcp.pop 32.0
    %v150 = vmul.f32 %v145, %v149
    %v151 = vmul.f32 %v148, %v149
    %v152 = vsub.f32 %v140, %v150
    %v153 = vsub.f32 %v141, %v151
    %v154 = vmul.f32 %v152, %v152
    %v155 = vmul.f32 %v153, %v153
    %v156 = vsel %vm142, %v154, 0.0
    %157 = vadd.xlane.f32.xlu0 %v156
    %v158 = vpop.xlane.xlu0 %157
    %v159 = vsel %vm142, %v155, 0.0
    %160 = vadd.xlane.f32.xlu0 %v159
    %v161 = vpop.xlane.xlu0 %160
    %v162 = vmul.f32 %v158, %v149
    %v163 = vmul.f32 %v161, %v149
    %v164 = vadd.f32 %v162, 1e-05
    %v165 = vadd.f32 %v163, 1e-05
    %v166 = vrsqrt.pop %v164
    %v167 = vrsqrt.pop %v165
    %v168 = vmul.f32 %v152, %v166
    %v169 = vmul.f32 %v153, %v167
    %v170 = vld [vmem:[%s5] sm:$0x1]
    %v172 = vlaneseq
    %v173 = vshrl.u32 %v172, 7
    %v174 = vsub.s32 0, %v173
    %v175 = vrot.slane %v170, %v174
    %v177 = vmul.f32 %v168, %v175
    %v178 = vmul.f32 %v169, %v175
    %v179 = vld [vmem:[%s6] sm:$0x1]
    %v181 = vlaneseq
    %v182 = vshrl.u32 %v181, 7
    %v183 = vsub.s32 0, %v182
    %v184 = vrot.slane %v179, %v183
    %v186 = vadd.f32 %v177, %v184
    %v187 = vadd.f32 %v178, %v184
    %v188 = vmul.f32 %v186, %v186
    %v189 = vmul.f32 %v187, %v187
    %v190 = vmul.f32 %v188, %v186
    %v191 = vmul.f32 %v189, %v187
    %v192 = vmul.f32 %v186, 0.5
    %v193 = vmul.f32 %v187, 0.5
    %v194 = vmul.f32 %v190, 0.044715
    %v195 = vmul.f32 %v191, 0.044715
    %v196 = vadd.f32 %v186, %v194
    %v197 = vadd.f32 %v187, %v195
    %v198 = vmul.f32 %v196, 0.7978846
    %v199 = vmul.f32 %v197, 0.7978846
    %v200 = vtanh.pop %v198
    %v201 = vtanh.pop %v199
    %v202 = vadd.f32 %v200, 1.0
    %v203 = vadd.f32 %v201, 1.0
    %v204 = vmul.f32 %v192, %v202
    %v205 = vmul.f32 %v193, %v203
    %v206 = vld [vmem:[%s7] sm:$0x1]
    %v208 = vlaneseq
    %v209 = vshrl.u32 %v208, 7
    %v210 = vsub.s32 0, %v209
    %v211 = vrot.slane %v206, %v210
    %v213 = vmul.f32 %v204, %v211
    %v214 = vmul.f32 %v205, %v211
    %v215 = vsel %vm142, %v213, 0.0
    %216 = vadd.xlane.f32.xlu0 %v215
    %v217 = vpop.xlane.xlu0 %216
    %v218 = vsel %vm142, %v214, 0.0
    %219 = vadd.xlane.f32.xlu0 %v218
    %v220 = vpop.xlane.xlu0 %219
    %s221 = sld [smem:[#allocation2]]
    %v222 = vstv %s221
    %v223 = vadd.f32 %v217, %v222
    %v224 = vadd.f32 %v220, %v222
    %v225 = vld [vmem:[%s2] sm:$0x3]
    %v227 = vlaneseq
    %v228 = vshrl.u32 %v227, 7
    %v229 = vsub.s32 0, %v228
    %v230 = vrot.slane %v225, %v229
    %232 = vbcast.lane.b32.xlu0 %v230, 256
    %v233 = vpop.permute.xlu0 %232
    %v234 = vlaneseq
    %v235 = vshrl.u32 %v234, 7
    %v236 = vsub.s32 1, %v235
    %v237 = vrot.slane %v225, %v236
    %239 = vbcast.lane.b32.xlu0 %v237, 256
    %v240 = vpop.permute.xlu0 %239
    %v243 = vadd.f32 %v223, %v233
    %v244 = vadd.f32 %v224, %v240
    %247 = vset.pattern.permute.xlu0 0
    %248 = vperm.xlu0 %247, %v243
    %v249 = vpop.permute.xlu0 %248
    %250 = vset.pattern.permute.xlu0 0
    %251 = vperm.xlu0 %250, %v244
    %v252 = vpop.permute.xlu0 %251
    %v253 = vlaneseq
    %v254 = vand.u32 %v253, 127
    %v255 = vlaneseq
    %v256 = vshrl.u32 %v255, 7
    %v257 = vsub.s32 %v254, %v256
    %v258 = vrot.slane %v249, %v257
    %v259 = vlaneseq
    %v260 = vshrl.u32 %v259, 7
    %v261 = vsub.s32 %v254, %v260
    %v262 = vrot.slane %v252, %v261
    %vm263 = vcmask 1041409
    %v264 = vsel %vm263, %v262, %v258
    %vm266 = vcmask 58368
    %v267 = vsel %vm266, %v264, -inf
    %268 = vmax.xlane.f32.xlu0 %v267
    %v269 = vpop.xlane.xlu0 %268
    %v271 = vlaneseq
    %v272 = vshrl.u32 %v271, 7
    %v273 = vsub.s32 0, %v272
    %v274 = vrot.slane %v269, %v273
    %v275 = vlaneseq
    %v276 = vshrl.u32 %v275, 7
    %v277 = vsub.s32 1, %v276
    %v278 = vrot.slane %v269, %v277
    %v281 = vsub.f32 %v243, %v274
    %v282 = vsub.f32 %v244, %v278
    %v283 = vmul.f32 %v281, 1.442695
    %v284 = vpow.pop %v283
    %v285 = vmul.f32 %v282, 1.442695
    %v286 = vpow.pop %v285
    %289 = vset.pattern.permute.xlu0 0
    %290 = vperm.xlu0 %289, %v284
    %v291 = vpop.permute.xlu0 %290
    %292 = vset.pattern.permute.xlu0 0
    %293 = vperm.xlu0 %292, %v286
    %v294 = vpop.permute.xlu0 %293
    %v295 = vlaneseq
    %v296 = vshrl.u32 %v295, 7
    %v297 = vsub.s32 %v254, %v296
    %v298 = vrot.slane %v291, %v297
    %v299 = vlaneseq
    %v300 = vshrl.u32 %v299, 7
    %v301 = vsub.s32 %v254, %v300
    %v302 = vrot.slane %v294, %v301
    %v303 = vsel %vm263, %v302, %v298
    %v305 = vsel %vm266, %v303, 0.0
    %306 = vadd.xlane.f32.xlu0 %v305
    %v307 = vpop.xlane.xlu0 %306
    %v308 = vrcp.pop %v307
    %v310 = vlaneseq
    %v311 = vshrl.u32 %v310, 7
    %v312 = vsub.s32 0, %v311
    %v313 = vrot.slane %v308, %v312
    %v314 = vlaneseq
    %v315 = vshrl.u32 %v314, 7
    %v316 = vsub.s32 1, %v315
    %v317 = vrot.slane %v308, %v316
    %v320 = vmul.f32 %v284, %v313
    %v321 = vmul.f32 %v286, %v317
    %v322 = vld [vmem:[%s1] sm:$0x3]
    %v324 = vlaneseq
    %v325 = vshrl.u32 %v324, 7
    %v326 = vsub.s32 0, %v325
    %v327 = vrot.slane %v322, %v326
    %329 = vbcast.lane.b32.xlu0 %v327, 256
    %v330 = vpop.permute.xlu0 %329
    %v331 = vlaneseq
    %v332 = vshrl.u32 %v331, 7
    %v333 = vsub.s32 1, %v332
    %v334 = vrot.slane %v322, %v333
    %336 = vbcast.lane.b32.xlu0 %v334, 256
    %v337 = vpop.permute.xlu0 %336
    %v340 = vmul.f32 %v320, %v330
    %v341 = vmul.f32 %v321, %v337
    %344 = vset.pattern.permute.xlu0 0
    %345 = vperm.xlu0 %344, %v340
    %v346 = vpop.permute.xlu0 %345
    %347 = vset.pattern.permute.xlu0 0
    %348 = vperm.xlu0 %347, %v341
    %v349 = vpop.permute.xlu0 %348
    %v350 = vlaneseq
    %v351 = vshrl.u32 %v350, 7
    %v352 = vsub.s32 %v254, %v351
    %v353 = vrot.slane %v346, %v352
    %v354 = vlaneseq
    %v355 = vshrl.u32 %v354, 7
    %v356 = vsub.s32 %v254, %v355
    %v357 = vrot.slane %v349, %v356
    %v358 = vsel %vm263, %v357, %v353
    %v360 = vsel %vm266, %v358, 0.0
    %361 = vadd.xlane.f32.xlu0 %v360
    %v362 = vpop.xlane.xlu0 %361
    %v363 = vmax.f32 %v362, 1e-10
    %v365 = vlaneseq
    %v366 = vshrl.u32 %v365, 7
    %v367 = vsub.s32 0, %v366
    %v368 = vrot.slane %v363, %v367
    %v369 = vlaneseq
    %v370 = vshrl.u32 %v369, 7
    %v371 = vsub.s32 1, %v370
    %v372 = vrot.slane %v363, %v371
    %v375 = vrcp.pop %v368
    %v376 = vmul.f32 %v340, %v375
    %v377 = vrcp.pop %v372
    %v378 = vmul.f32 %v341, %v377
    %380 = vset.pattern.permute.xlu0 0
    %381 = vperm.xlu0 %380, %v376
    %v382 = vpop.permute.xlu0 %381
    %385 = vset.pattern.permute.xlu0 0
    %386 = vperm.xlu0 %385, %v378
    %v387 = vpop.permute.xlu0 %386
    %v389 = vmul.f32 %v40, %v382
    %v390 = vmul.f32 %v41, %v387
    %v391 = vrot.slane %v389, 4
    %v392 = vadd.f32 %v389, %v391
    %v393 = vrot.slane %v392, 2
    %v394 = vadd.f32 %v392, %v393
    %v395 = vrot.slane %v394, 1
    %v396 = vadd.f32 %v394, %v395
    %v397 = vrot.slane %v390, 4
    %v398 = vadd.f32 %v390, %v397
    %v399 = vrot.slane %v398, 2
    %v400 = vadd.f32 %v398, %v399
    %v401 = vrot.slane %v400, 1
    %v402 = vadd.f32 %v400, %v401
    %v403 = vld [vmem:[%s9] sm:$0xff]
    %v404 = vld [vmem:[%s9 + $0x8] sm:$0xff]
    %v405 = vld [vmem:[%s9 + $0x10] sm:$0xff]
    %v406 = vld [vmem:[%s9 + $0x18] sm:$0xff]
    %v407 = vld [vmem:[%s9 + $0x20] sm:$0xff]
    %v408 = vld [vmem:[%s9 + $0x28] sm:$0xff]
    %v409 = vld [vmem:[%s9 + $0x30] sm:$0xff]
    %v410 = vld [vmem:[%s9 + $0x38] sm:$0xff]
    %v411 = vld [vmem:[%s9 + $0x40] sm:$0xff]
    %v412 = vld [vmem:[%s9 + $0x48] sm:$0xff]
    %v413 = vld [vmem:[%s9 + $0x50] sm:$0xff]
    %v414 = vld [vmem:[%s9 + $0x58] sm:$0xff]
    %v415 = vld [vmem:[%s9 + $0x60] sm:$0xff]
    %v416 = vld [vmem:[%s9 + $0x68] sm:$0xff]
    %v417 = vld [vmem:[%s9 + $0x70] sm:$0xff]
    %v418 = vld [vmem:[%s9 + $0x78] sm:$0xff]
    %v419 = vld [vmem:[%s10] sm:$0x1]
    %v421 = vlaneseq
    %v422 = vshrl.u32 %v421, 7
    %v423 = vsub.s32 0, %v422
    %v424 = vrot.slane %v419, %v423
    %v428 = vsel %vm263, %v402, %v396
    %430 = vmatprep.subr.mxu0 0.0
    %431 = vmatpush1.msra.mxu0 %v403
    %432 = vmatprep.subr.mxu0 0.0
    %433 = vmatpush1.msra.mxu0 %v404
    %434 = vmatprep.subr.mxu0 0.0
    %435 = vmatpush1.msra.mxu0 %v405
    %436 = vmatprep.subr.mxu0 0.0
    %437 = vmatpush1.msra.mxu0 %v406
    %438 = vmatprep.subr.mxu0 0.0
    %439 = vmatpush1.msra.mxu0 %v407
    %440 = vmatprep.subr.mxu0 0.0
    %441 = vmatpush1.msra.mxu0 %v408
    %442 = vmatprep.subr.mxu0 0.0
    %443 = vmatpush1.msra.mxu0 %v409
    %444 = vmatprep.subr.mxu0 0.0
    %445 = vmatpush1.msra.mxu0 %v410
    %446 = vmatprep.subr.mxu0 0.0
    %447 = vmatpush1.msra.mxu0 %v411
    %448 = vmatprep.subr.mxu0 0.0
    %449 = vmatpush1.msra.mxu0 %v412
    %450 = vmatprep.subr.mxu0 0.0
    %451 = vmatpush1.msra.mxu0 %v413
    %452 = vmatprep.subr.mxu0 0.0
    %453 = vmatpush1.msra.mxu0 %v414
    %454 = vmatprep.subr.mxu0 0.0
    %455 = vmatpush1.msra.mxu0 %v415
    %456 = vmatprep.subr.mxu0 0.0
    %457 = vmatpush1.msra.mxu0 %v416
    %458 = vmatprep.subr.mxu0 0.0
    %459 = vmatpush1.msra.mxu0 %v417
    %460 = vmatprep.subr.mxu0 0.0
    %461 = vmatpush1.msra.mxu0 %v418
    %462 = vmatprep.subr.mxu0 0.0
    %463 = vmatpush1.msra.mxu0 0.0
    %464 = vmatprep.subr.mxu0 0.0
    %465 = vmatpush1.msra.mxu0 0.0
    %466 = vmatprep.subr.mxu0 0.0
    %467 = vmatpush1.msra.mxu0 0.0
    %468 = vmatprep.subr.mxu0 0.0
    %469 = vmatpush1.msra.mxu0 0.0
    %470 = vmatprep.subr.mxu0 0.0
    %471 = vmatpush1.msra.mxu0 0.0
    %472 = vmatprep.subr.mxu0 0.0
    %473 = vmatpush1.msra.mxu0 0.0
    %474 = vmatprep.subr.mxu0 0.0
    %475 = vmatpush1.msra.mxu0 0.0
    %476 = vmatprep.subr.mxu0 0.0
    %477 = vmatpush1.msra.mxu0 0.0
    %478 = vmatprep.subr.mxu0 0.0
    %479 = vmatpush1.msra.mxu0 0.0
    %480 = vmatprep.subr.mxu0 0.0
    %481 = vmatpush1.msra.mxu0 0.0
    %482 = vmatprep.subr.mxu0 0.0
    %483 = vmatpush1.msra.mxu0 0.0
    %484 = vmatprep.subr.mxu0 0.0
    %485 = vmatpush1.msra.mxu0 0.0
    %486 = vmatprep.subr.mxu0 0.0
    %487 = vmatpush1.msra.mxu0 0.0
    %488 = vmatprep.subr.mxu0 0.0
    %489 = vmatpush1.msra.mxu0 0.0
    %490 = vmatprep.subr.mxu0 0.0
    %491 = vmatpush1.msra.mxu0 0.0
    %492 = vmatprep.subr.mxu0 0.0
    %493 = vmatpush1.msra.mxu0 0.0
    %494 = vmatprep.mubr.f32.mxu0 0.0
    %495 = vmatmul.mubr.f32.gmra.mrb[0].mxu0 %v428
    %v496 = vpop.f32.mrb[0].mxu0
    %v497 = vadd.f32 %v424, %v496
    %v498 = vpop.f32.mrb[0].mxu0
    %499 = vdwg.mxu0
    %500 = vst [vmem:[#allocation3] sm:$0x3] %v497
    // Predicated region
    $region46: #{tpu_custom_call.1} parent=1 // pred_check
      _
    $region47: #{tpu_custom_call.1} parent=1 // pred_check_branch
      %502 = sbr.rel (0) target = $region49
    $region48: #{tpu_custom_call.1} parent=1 // pred_region
      %s504 = ssub.s32 32, 32
      %505 = vsyncadd [#allocation4], %s504
      %s507 = sshll.u32 [#allocation3], 4
      %s508 = int_to_ptr.vmem [resolvable:$true] %s507
      %510 = dma.vmem_to_hbm [thread:$0]  %s508, 32, %s11, [#allocation4]
    $region49: #{tpu_custom_call.1} parent=1 // pred_fallthru
      _
    // Predicated region
    $region50: #{tpu_custom_call.1} parent=1 // pred_check
      _
    $region51: #{tpu_custom_call.1} parent=1 // pred_check_branch
      %512 = sbr.rel (0) target = $region53
    $region52: #{tpu_custom_call.1} parent=1 // pred_region
      %513 = dma.done [#allocation4], 32
    $region53: #{tpu_custom_call.1} parent=1 // pred_fallthru
      _
    %514 = vsyncpa [#allocation4], 1

</llo_original>
